<compile_context>
chip_gen: v6e
topology: v6e:2x2x1
jax: 0.10.0
libtpu: 0.0.40
codegen_flags: <defaults>
</compile_context>

<pallas_src>
import functools

import jax
import jax.numpy as jnp
from jax.experimental import pallas as pl
from jax.experimental.pallas import tpu as pltpu

# Large finite negative for masking: NaN-free, and exp(NEG_INF - m) underflows to 0.
_NEG_INF = -1e30


def _pick_tile(n, preferred):
    for p in preferred:
        if p <= n and n % p == 0:
            return p
    return n


def _vmem_limit_bytes():
    # v5e/v6e: 128 MiB physical VMEM -> allow ~100 MiB (bigger tiles / deeper buffers).
    # v7x: 64 MiB physical -> stay <= ~48 MiB and rely on tiling instead.
    try:
        cap = int(pltpu.get_tpu_info().vmem_capacity_bytes)
    except Exception:
        cap = 64 * 1024 * 1024
    return int(min(cap - 16 * 1024 * 1024, 100 * 1024 * 1024))


# ----------------------------- fused QKV projection ----------------------------------

def _qkv_proj_kernel(x_ref, wqkv_ref, q_ref, k_ref, v_ref, acc_ref, *, d_out):
    kc = pl.program_id(1)

    @pl.when(kc == 0)
    def _init():
        acc_ref[...] = jnp.zeros_like(acc_ref)

    # One wide MXU matmul per (row-block, d_in-block): (tm, tki) @ (tki, 3*d_out).
    acc_ref[...] += jnp.dot(x_ref[...], wqkv_ref[...],
                            preferred_element_type=jnp.float32)

    @pl.when(kc == pl.num_programs(1) - 1)
    def _finalize():
        qkv = acc_ref[...]
        q_ref[...] = qkv[:, :d_out].astype(q_ref.dtype)
        k_ref[...] = qkv[:, d_out:2 * d_out].astype(k_ref.dtype)
        v_ref[...] = qkv[:, 2 * d_out:].astype(v_ref.dtype)


# ------------------- flash attention (online softmax) + output projection ------------

def _flash_mha_kernel(q_ref, k_ref, v_ref, wo_ref, bo_ref, o_ref,
                      m_ref, l_ref, acc_ref, q3_ref,
                      *, num_heads, head_dim, block_q, block_kv):
    qi = pl.program_id(1)
    ki = pl.program_id(2)
    H, hd, tq, tk = num_heads, head_dim, block_q, block_kv
    scale = 1.0 / (hd ** 0.5)

    first_q = qi * tq
    last_q = first_q + tq - 1
    first_k = ki * tk
    last_k = first_k + tk - 1
    # Index of the last kv block this q block actually needs (causal).
    last_needed_kv = last_q // tk

    @pl.when(ki == 0)
    def _init():
        m_ref[...] = jnp.full_like(m_ref, _NEG_INF)
        l_ref[...] = jnp.zeros_like(l_ref)
        acc_ref[...] = jnp.zeros_like(acc_ref)
        # Hoisted loop-invariant: reshape/transpose q once per q block and fold in the
        # 1/sqrt(hd) scale (removes an XLU relayout + (H,tq,tk) multiply per kv step).
        q3 = jnp.transpose(q_ref[0].reshape(tq, H, hd), (1, 0, 2))   # (H, tq, hd)
        q3_ref[...] = (q3.astype(jnp.float32) * scale).astype(q3_ref.dtype)

    def _update(apply_mask):
        # Head-batched layout; heads are the dot_general batch dim, so all heads
        # stream through the MXU back-to-back (no per-head Python loop).
        k3 = jnp.transpose(k_ref[0].reshape(tk, H, hd), (1, 0, 2))   # (H, tk, hd)
        v3 = jnp.transpose(v_ref[0].reshape(tk, H, hd), (1, 0, 2))   # (H, tk, hd)

        s = jax.lax.dot_general(                                      # (H, tq, tk) f32
            q3_ref[...], k3, (((2,), (2,)), ((0,), (0,))),
            preferred_element_type=jnp.float32)

        if apply_mask:
            # Per-block causal mask, only for diagonal-straddling blocks.
            q_pos = first_q + jax.lax.broadcasted_iota(jnp.int32, (tq, tk), 0)
            k_pos = first_k + jax.lax.broadcasted_iota(jnp.int32, (tq, tk), 1)
            s = jnp.where((k_pos > q_pos)[None, :, :], _NEG_INF, s)

        # Online softmax update, batched over heads.
        m_prev = m_ref[...]                                           # (H, tq, 1)
        m_new = jnp.maximum(m_prev, jnp.max(s, axis=-1, keepdims=True))
        alpha = jnp.exp(m_prev - m_new)
        p = jnp.exp(s - m_new)                                        # (H, tq, tk)

        l_ref[...] = alpha * l_ref[...] + jnp.sum(p, axis=-1, keepdims=True)
        pv = jax.lax.dot_general(                                     # (H, tq, hd) f32
            p.astype(v3.dtype), v3, (((2,), (1,)), ((0,), (0,))),
            preferred_element_type=jnp.float32)
        acc_ref[...] = alpha * acc_ref[...] + pv
        m_ref[...] = m_new

    do_compute = ki <= last_needed_kv          # causal block skipping
    needs_mask = last_k > first_q              # block straddles the diagonal

    @pl.when(jnp.logical_and(do_compute, jnp.logical_not(needs_mask)))
    def _compute_full():
        _update(apply_mask=False)

    @pl.when(jnp.logical_and(do_compute, needs_mask))
    def _compute_masked():
        _update(apply_mask=True)

    # Finalize at the last NEEDED kv block (trailing above-diagonal steps are no-ops).
    @pl.when(ki == last_needed_kv)
    def _finalize():
        # Approx (EUP) reciprocal only when outputs are not f32 (keeps f32 parity tight).
        approx = o_ref.dtype != jnp.float32
        inv_l = pl.reciprocal(l_ref[...], approx=approx)
        ctx = acc_ref[...] * inv_l                                    # (H, tq, hd)
        ctx = jnp.transpose(ctx, (1, 0, 2)).reshape(tq, H * hd)       # -> (tq, d_out)
        out = jnp.dot(ctx.astype(wo_ref.dtype), wo_ref[...],
                      preferred_element_type=jnp.float32) + bo_ref[...].astype(jnp.float32)
        o_ref[0] = out.astype(o_ref.dtype)


# ------------------------------------ wrapper -----------------------------------------

def mha_forward(x, wq, wk, wv, wo, bo, *, num_heads, block_q=None, block_kv=None,
                qkv_dtype=None):
    """Causal multi-head attention + out-projection (eval mode, dropout = 0).

    x: (B, T, d_in); wq/wk/wv: (d_in, d_out); wo: (d_out, d_out); bo: (1, d_out).
    Weights are the transposed PyTorch nn.Linear weights (y = x @ W + b).
    qkv_dtype: dtype used for the q/k/v HBM round trip between the two kernels
      (None -> x.dtype).  Pass jnp.bfloat16 for f32 models to halve that traffic and
      use the bf16 MXU path (softmax math stays f32).
    """
    B, T, d_in = x.shape
    d_out = wq.shape[1]
    assert d_out % num_heads == 0
    head_dim = d_out // num_heads
    dtype = x.dtype
    isz = jnp.dtype(dtype).itemsize
    qkv_store_dtype = jnp.dtype(qkv_dtype) if qkv_dtype is not None else jnp.dtype(dtype)
    qkv_isz = qkv_store_dtype.itemsize
    vmem_limit = _vmem_limit_bytes()

    # ---- 1) fused QKV projection (row-blocked, d_in contraction tiled) ---------------
    wqkv = jnp.concatenate([wq, wk, wv], axis=1)            # (d_in, 3*d_out)
    rows = B * T
    x2d = x.reshape(rows, d_in)
    tm = _pick_tile(rows, (2048, 1024, 512, 256, 128, 64, 32, 16, 8))
    # Keep the f32 accumulator scratch (tm, 3*d_out) modest so very wide models fit.
    while tm > 8 and tm % 2 == 0 and tm * 3 * d_out * 4 > 16 * 1024 * 1024:
        tm //= 2
    tki = _pick_tile(d_in, (512, 256, 128, 64, 32, 16, 8))
    num_kc = d_in // tki
    # TODO(synk): also tile the 3*d_out (N) axis for extremely wide d_out on v7x.

    q2d, k2d, v2d = pl.pallas_call(
        functools.partial(_qkv_proj_kernel, d_out=d_out),
        out_shape=[jax.ShapeDtypeStruct((rows, d_out), qkv_store_dtype)] * 3,
        grid_spec=pltpu.PrefetchScalarGridSpec(
            num_scalar_prefetch=0,
            grid=(rows // tm, num_kc),
            in_specs=[
                pl.BlockSpec((tm, tki), lambda i, c: (i, c)),
                pl.BlockSpec((tki, 3 * d_out), lambda i, c: (c, 0)),
            ],
            out_specs=[pl.BlockSpec((tm, d_out), lambda i, c: (i, 0))] * 3,
            scratch_shapes=[pltpu.VMEM((tm, 3 * d_out), jnp.float32)],
        ),
        compiler_params=pltpu.CompilerParams(
            dimension_semantics=("parallel", "arbitrary"),
            vmem_limit_bytes=vmem_limit),
        cost_estimate=pl.CostEstimate(
            flops=2 * rows * d_in * 3 * d_out,
            transcendentals=0,
            bytes_accessed=isz * (rows * d_in + d_in * 3 * d_out)
                           + qkv_isz * 3 * rows * d_out),
    )(x2d, wqkv)

    q = q2d.reshape(B, T, d_out)
    k = k2d.reshape(B, T, d_out)
    v = v2d.reshape(B, T, d_out)

    # ---- 2) flash attention + output projection ---------------------------------------
    # Production-sized default tiles (tq up to 256, tk up to 512).
    tq = block_q or _pick_tile(T, (256, 128, 64, 32, 16, 8))
    tk = block_kv or _pick_tile(T, (512, 256, 128, 64, 32, 16, 8))
    assert T % tq == 0 and T % tk == 0
    num_q, num_kv = T // tq, T // tk

    def q_map(b, qi, ki):
        return (b, qi, 0)

    def kv_map(b, qi, ki):
        # Clamp above-diagonal kv blocks to the last needed block: their compute is
        # skipped, and because the block index does not advance their DMA is skipped too.
        return (b, jnp.minimum(ki, ((qi + 1) * tq - 1) // tk), 0)

    def const_map(b, qi, ki):
        return (0, 0)

    # With small kv tiles, triple-buffer k/v to hide DMA latency behind short compute.
    kv_kwargs = {}
    if tk <= 128 and num_kv > 2:
        kv_kwargs["pipeline_mode"] = pl.Buffered(3)

    kernel = functools.partial(_flash_mha_kernel, num_heads=num_heads,
                               head_dim=head_dim, block_q=tq, block_kv=tk)

    attn_flops = (4 * B * num_heads * T * T * head_dim) // 2 + 2 * B * T * d_out * d_out
    out = pl.pallas_call(
        kernel,
        out_shape=jax.ShapeDtypeStruct((B, T, d_out), dtype),
        grid_spec=pltpu.PrefetchScalarGridSpec(
            num_scalar_prefetch=0,
            grid=(B, num_q, num_kv),
            in_specs=[
                pl.BlockSpec((1, tq, d_out), q_map),
                pl.BlockSpec((1, tk, d_out), kv_map, **kv_kwargs),
                pl.BlockSpec((1, tk, d_out), kv_map, **kv_kwargs),
                pl.BlockSpec((d_out, d_out), const_map),   # constant: fetched once
                pl.BlockSpec((1, d_out), const_map),
            ],
            out_specs=pl.BlockSpec((1, tq, d_out), q_map),
            scratch_shapes=[
                pltpu.VMEM((num_heads, tq, 1), jnp.float32),            # running max m
                pltpu.VMEM((num_heads, tq, 1), jnp.float32),            # running sum l
                pltpu.VMEM((num_heads, tq, head_dim), jnp.float32),     # context accum
                pltpu.VMEM((num_heads, tq, head_dim), qkv_store_dtype), # hoisted scaled q
            ],
        ),
        compiler_params=pltpu.CompilerParams(
            # parallel batch + q-block axes shard across megacore / v7x's 2 TCs;
            # kv axis is the online-softmax reduction.
            dimension_semantics=("parallel", "parallel", "arbitrary"),
            vmem_limit_bytes=vmem_limit),
        cost_estimate=pl.CostEstimate(
            flops=attn_flops,
            transcendentals=(B * num_heads * T * T) // 2,
            bytes_accessed=qkv_isz * 3 * B * T * d_out
                           + isz * (d_out * d_out + d_out + B * T * d_out)),
    )(q, k, v, wo, bo)
    return out


# ------------------------------------ reference ---------------------------------------

def mha_reference(x, wq, wk, wv, wo, bo, *, num_heads):
    """Pure-JAX reference mirroring the PyTorch forward (eval mode)."""
    B, T, d_in = x.shape
    d_out = wq.shape[1]
    hd = d_out // num_heads
    q = (x @ wq).reshape(B, T, num_heads, hd).transpose(0, 2, 1, 3)
    k = (x @ wk).reshape(B, T, num_heads, hd).transpose(0, 2, 1, 3)
    v = (x @ wv).reshape(B, T, num_heads, hd).transpose(0, 2, 1, 3)
    s = jnp.einsum('bhqd,bhkd->bhqk', q, k)
    mask = jnp.triu(jnp.ones((T, T), dtype=bool), k=1)
    s = jnp.where(mask, -jnp.inf, s)
    w = jax.nn.softmax(s / (hd ** 0.5), axis=-1)
    ctx = jnp.einsum('bhqk,bhkd->bhqd', w, v).transpose(0, 2, 1, 3).reshape(B, T, d_out)
    return ctx @ wo + bo


if __name__ == "__main__":
    # Small shapes consistent with the module's forward (lane-dense d_out = 128).
    B, T = 2, 128
    d_in, d_out = 64, 128
    num_heads = 4            # head_dim = 32 (note: MXU is thin at hd=32; VPU/XLU-bound)
    dropout = 0.0            # eval / identity dropout

    key = jax.random.PRNGKey(0)
    kx, kq, kk, kv_, ko, kb = jax.random.split(key, 6)

    x = jax.random.normal(kx, (B, T, d_in), dtype=jnp.float32)
    # Deterministic synthetic parameters (stored as (in, out), i.e. PyTorch weight.T).
    wq = 0.02 * jax.random.normal(kq, (d_in, d_out), dtype=jnp.float32)
    wk = 0.02 * jax.random.normal(kk, (d_in, d_out), dtype=jnp.float32)
    wv = 0.02 * jax.random.normal(kv_, (d_in, d_out), dtype=jnp.float32)
    wo = 0.02 * jax.random.normal(ko, (d_out, d_out), dtype=jnp.float32)
    bo = 0.02 * jax.random.normal(kb, (1, d_out), dtype=jnp.float32)

    ref = mha_reference(x, wq, wk, wv, wo, bo, num_heads=num_heads)

    # 1) f32, default (auto-picked) tiles: tq = tk = 128 at this T.
    out = mha_forward(x, wq, wk, wv, wo, bo, num_heads=num_heads)
    out = jax.block_until_ready(out)
    assert out.shape == (B, T, d_out)
    assert jnp.allclose(out, ref, atol=2e-3, rtol=2e-3), "f32 (default tiles) mismatch"

    # 2) f32 with 32-wide blocks, only to exercise the multi-kv-block online softmax,
    #    causal block skipping, partial-mask branch and Buffered(3) k/v pipelining at
    #    this tiny T (production defaults pick 128-512 blocks).
    out_blk = mha_forward(x, wq, wk, wv, wo, bo, num_heads=num_heads,
                          block_q=32, block_kv=32)
    out_blk = jax.block_until_ready(out_blk)
    assert jnp.allclose(out_blk, ref, atol=2e-3, rtol=2e-3), "f32 (32-blocks) mismatch"

    # 3) f32 activations with a bf16 q/k/v round trip between the two kernels
    #    (halves inter-kernel HBM traffic, bf16 MXU path; softmax math stays f32).
    out_c = mha_forward(x, wq, wk, wv, wo, bo, num_heads=num_heads,
                        qkv_dtype=jnp.bfloat16)
    out_c = jax.block_until_ready(out_c)
    assert out_c.dtype == jnp.float32
    assert jnp.allclose(out_c, ref, atol=1e-2, rtol=2e-2), "f32+bf16-qkv mismatch"

    # 4) bf16 weights/activations with f32 accumulation (MXU bf16 path).
    bf = lambda a: a.astype(jnp.bfloat16)
    out_bf16 = mha_forward(bf(x), bf(wq), bf(wk), bf(wv), bf(wo), bf(bo),
                           num_heads=num_heads)
    out_bf16 = jax.block_until_ready(out_bf16)
    assert out_bf16.dtype == jnp.bfloat16
    assert jnp.allclose(out_bf16.astype(jnp.float32), ref, atol=2e-2, rtol=5e-2), \
        "bf16 mismatch vs reference"

    print("KERNEL_OK")
</pallas_src>

<mosaic_0001>
module attributes {stable_mosaic.version = 11 : i64} {
  func.func @_qkv_proj_kernel(%arg0: i32, %arg1: i32, %arg2: memref<256x64xf32, #tpu.memory_space<vmem>>, %arg3: memref<64x384xf32, #tpu.memory_space<vmem>>, %arg4: memref<256x128xf32, #tpu.memory_space<vmem>>, %arg5: memref<256x128xf32, #tpu.memory_space<vmem>>, %arg6: memref<256x128xf32, #tpu.memory_space<vmem>>, %arg7: memref<256x384xf32, #tpu.memory_space<vmem>>) attributes {dimension_semantics = [#tpu.dimension_semantics<parallel>, #tpu.dimension_semantics<arbitrary>], iteration_bounds = array<i64: 1, 1>, scalar_prefetch = 0 : i64, scratch_operands = 1 : i64, tpu.core_type = #tpu.core_type<tc>, window_params = [{transform_indices = @transform_0, window_bounds = array<i64: 256, 64>}, {transform_indices = @transform_1, window_bounds = array<i64: 64, 384>}, {transform_indices = @transform_2, window_bounds = array<i64: 256, 128>}, {transform_indices = @transform_3, window_bounds = array<i64: 256, 128>}, {transform_indices = @transform_4, window_bounds = array<i64: 256, 128>}]} {
    %c0_i32 = arith.constant 0 : i32
    %0 = arith.cmpi eq, %arg1, %c0_i32 : i32
    %1 = arith.extui %0 : i1 to i32
    %c0_i32_0 = arith.constant 0 : i32
    %2 = arith.cmpi ne, %1, %c0_i32_0 : i32
    scf.if %2 {
      %cst_10 = arith.constant 0.000000e+00 : f32
      %12 = vector.broadcast %cst_10 : f32 to vector<256x384xf32>
      %c0_11 = arith.constant 0 : index
      %c0_12 = arith.constant 0 : index
      %13 = vector.load %arg7[%c0_11, %c0_12] : memref<256x384xf32, #tpu.memory_space<vmem>>, vector<256x384xf32>
      tpu.vector_store %arg7[%c0_11, %c0_12], %12 {strides = array<i32>} : memref<256x384xf32, #tpu.memory_space<vmem>>, vector<256x384xf32>,
    } else {
    }
    %c0 = arith.constant 0 : index
    %c0_1 = arith.constant 0 : index
    %3 = vector.load %arg7[%c0, %c0_1] : memref<256x384xf32, #tpu.memory_space<vmem>>, vector<256x384xf32>
    %c0_2 = arith.constant 0 : index
    %c0_3 = arith.constant 0 : index
    %4 = vector.load %arg2[%c0_2, %c0_3] : memref<256x64xf32, #tpu.memory_space<vmem>>, vector<256x64xf32>
    %c0_4 = arith.constant 0 : index
    %c0_5 = arith.constant 0 : index
    %5 = vector.load %arg3[%c0_4, %c0_5] : memref<64x384xf32, #tpu.memory_space<vmem>>, vector<64x384xf32>
    %cst = arith.constant dense<0.000000e+00> : vector<256x384xf32>
    %6 = tpu.matmul %4, %5, %cst {dimension_numbers = #tpu.dot_dimension_numbers<[1], [0], [0], [1], [0, 0, 1, 1], [], []>} : vector<256x64xf32>, vector<64x384xf32>, vector<256x384xf32> -> vector<256x384xf32>
    %7 = arith.addf %3, %6 : vector<256x384xf32>
    %c0_6 = arith.constant 0 : index
    %c0_7 = arith.constant 0 : index
    %8 = vector.load %arg7[%c0_6, %c0_7] : memref<256x384xf32, #tpu.memory_space<vmem>>, vector<256x384xf32>
    tpu.vector_store %arg7[%c0_6, %c0_7], %7 {strides = array<i32>} : memref<256x384xf32, #tpu.memory_space<vmem>>, vector<256x384xf32>,
    %c0_i32_8 = arith.constant 0 : i32
    %9 = arith.cmpi eq, %arg1, %c0_i32_8 : i32
    %10 = arith.extui %9 : i1 to i32
    %c0_i32_9 = arith.constant 0 : i32
    %11 = arith.cmpi ne, %10, %c0_i32_9 : i32
    scf.if %11 {
      %c0_10 = arith.constant 0 : index
      %c0_11 = arith.constant 0 : index
      %12 = vector.load %arg7[%c0_10, %c0_11] : memref<256x384xf32, #tpu.memory_space<vmem>>, vector<256x384xf32>
      %13 = vector.extract_strided_slice %12 {offsets = [0, 0], sizes = [256, 128], strides = [1, 1]} : vector<256x384xf32> to vector<256x128xf32>
      %c0_12 = arith.constant 0 : index
      %c0_13 = arith.constant 0 : index
      %14 = vector.load %arg4[%c0_12, %c0_13] : memref<256x128xf32, #tpu.memory_space<vmem>>, vector<256x128xf32>
      tpu.vector_store %arg4[%c0_12, %c0_13], %13 {strides = array<i32>} : memref<256x128xf32, #tpu.memory_space<vmem>>, vector<256x128xf32>,
      %15 = vector.extract_strided_slice %12 {offsets = [0, 128], sizes = [256, 128], strides = [1, 1]} : vector<256x384xf32> to vector<256x128xf32>
      %c0_14 = arith.constant 0 : index
      %c0_15 = arith.constant 0 : index
      %16 = vector.load %arg5[%c0_14, %c0_15] : memref<256x128xf32, #tpu.memory_space<vmem>>, vector<256x128xf32>
      tpu.vector_store %arg5[%c0_14, %c0_15], %15 {strides = array<i32>} : memref<256x128xf32, #tpu.memory_space<vmem>>, vector<256x128xf32>,
      %17 = vector.extract_strided_slice %12 {offsets = [0, 256], sizes = [256, 128], strides = [1, 1]} : vector<256x384xf32> to vector<256x128xf32>
      %c0_16 = arith.constant 0 : index
      %c0_17 = arith.constant 0 : index
      %18 = vector.load %arg6[%c0_16, %c0_17] : memref<256x128xf32, #tpu.memory_space<vmem>>, vector<256x128xf32>
      tpu.vector_store %arg6[%c0_16, %c0_17], %17 {strides = array<i32>} : memref<256x128xf32, #tpu.memory_space<vmem>>, vector<256x128xf32>,
    } else {
    }
    return
  }
  func.func @transform_0(%arg0: i32, %arg1: i32) -> (i32, i32) {
    %c0_i32 = arith.constant 0 : i32
    return %arg0, %arg1 : i32, i32
  }
  func.func @transform_1(%arg0: i32, %arg1: i32) -> (i32, i32) {
    %c0_i32 = arith.constant 0 : i32
    %c0_i32_0 = arith.constant 0 : i32
    return %arg1, %c0_i32 : i32, i32
  }
  func.func @transform_2(%arg0: i32, %arg1: i32) -> (i32, i32) {
    %c0_i32 = arith.constant 0 : i32
    %c0_i32_0 = arith.constant 0 : i32
    return %arg0, %c0_i32 : i32, i32
  }
  func.func @transform_3(%arg0: i32, %arg1: i32) -> (i32, i32) {
    %c0_i32 = arith.constant 0 : i32
    %c0_i32_0 = arith.constant 0 : i32
    return %arg0, %c0_i32 : i32, i32
  }
  func.func @transform_4(%arg0: i32, %arg1: i32) -> (i32, i32) {
    %c0_i32 = arith.constant 0 : i32
    %c0_i32_0 = arith.constant 0 : i32
    return %arg0, %c0_i32 : i32, i32
  }
}

</mosaic_0001>

<llo_original>
// kernel: tpu_custom_call.1
$region0: #{tpu_custom_call.1}
  #allocation0 [shape = 'u32[]', space=smem, size = 0x4, offset = 0x4, fixed_abs, tag = 'smem constant byte address 0x4 - core index']
  #allocation1 [shape = 'u32[144,128]{1,0:T(1,128)}', space=vmem, size = 0x12000, scoped, tag = 'internal scratch']
  #allocation2 [shape = 'f32[256,384]{1,0:T(8,128)}', space=vmem, size = 0x60000, scoped, tag = 'scratch operand']
  %s0 = inlined_call_operand.vmem [shape: f32[256,64], index: 0, kind: input, shape index: {}]
  %s1 = inlined_call_operand.vmem [shape: f32[64,384], index: 1, kind: input, shape index: {}]
  %s2 = inlined_call_operand.hbm [shape: f32[256,128], index: 2, kind: output, shape index: {0}]
  %s3 = inlined_call_operand.hbm [shape: f32[256,128], index: 3, kind: output, shape index: {1}]
  %s4 = inlined_call_operand.hbm [shape: f32[256,128], index: 4, kind: output, shape index: {2}]
  %5 = xla_tuple %s2, %s3, %s4
  %s6 = sld [smem:[#allocation0]]
  $region42: #{tpu_custom_call.1} parent=0
    _
  %s8 = ssub.s32 1, %s6
  %s9 = scalar_select 0, %s8, %s6
  $region1: #{tpu_custom_call.1} parent=0
    #allocation3 [shape = 'u8[131072]{0}', space=vmem, size = 0x20000, scoped, tag = 'output window, operand 0, single buffered']
    #allocation4 [shape = 's32[1]{0}', space=sflag, size = 0x4, scoped, tag = 'scoped memory for tpu_custom_call.1']
    #allocation5 [shape = 'u8[131072]{0}', space=vmem, size = 0x20000, scoped, tag = 'output window, operand 1, single buffered']
    #allocation6 [shape = 's32[1]{0}', space=sflag, size = 0x4, scoped, tag = 'scoped memory for tpu_custom_call.1']
    #allocation7 [shape = 'u8[131072]{0}', space=vmem, size = 0x20000, scoped, tag = 'output window, operand 2, single buffered']
    %10 = vsyncpa [#allocation4], 0
    %11 = vsyncpa [#allocation6], 0
    // Predicated region
    $region2: #{tpu_custom_call.1} parent=1 // pred_check
      _
    $region3: #{tpu_custom_call.1} parent=1 // pred_check_branch
      %13 = sbr.rel (0) target = $region5
    $region4: #{tpu_custom_call.1} parent=1 // pred_region
      _
    $region5: #{tpu_custom_call.1} parent=1 // pred_fallthru
      _
    // Predicated region
    $region6: #{tpu_custom_call.1} parent=1 // pred_check
      _
    $region7: #{tpu_custom_call.1} parent=1 // pred_check_branch
      %15 = sbr.rel (0) target = $region9
    $region8: #{tpu_custom_call.1} parent=1 // pred_region
      _
    $region9: #{tpu_custom_call.1} parent=1 // pred_fallthru
      _
    %p16 = scmp.eq.s32.totalorder 0, 0
    // Predicated region
    $region10: #{tpu_custom_call.1} parent=1 // pred_check
      %p17 = pneg %p16
    $region11: #{tpu_custom_call.1} parent=1 // pred_check_branch
      %19 = sbr.rel (%p17) target = $region13
    $region12: #{tpu_custom_call.1} parent=1 // pred_region
      %20 = vst [vmem:[#allocation2] sm:$0xff] 0.0
      %21 = vst [vmem:[#allocation2 + $0x8] sm:$0xff] 0.0
      %22 = vst [vmem:[#allocation2 + $0x10] sm:$0xff] 0.0
      %23 = vst [vmem:[#allocation2 + $0x18] sm:$0xff] 0.0
      %24 = vst [vmem:[#allocation2 + $0x20] sm:$0xff] 0.0
      %25 = vst [vmem:[#allocation2 + $0x28] sm:$0xff] 0.0
      %26 = vst [vmem:[#allocation2 + $0x30] sm:$0xff] 0.0
      %27 = vst [vmem:[#allocation2 + $0x38] sm:$0xff] 0.0
      %28 = vst [vmem:[#allocation2 + $0x40] sm:$0xff] 0.0
      %29 = vst [vmem:[#allocation2 + $0x48] sm:$0xff] 0.0
      %30 = vst [vmem:[#allocation2 + $0x50] sm:$0xff] 0.0
      %31 = vst [vmem:[#allocation2 + $0x58] sm:$0xff] 0.0
      %32 = vst [vmem:[#allocation2 + $0x60] sm:$0xff] 0.0
      %33 = vst [vmem:[#allocation2 + $0x68] sm:$0xff] 0.0
      %34 = vst [vmem:[#allocation2 + $0x70] sm:$0xff] 0.0
      %35 = vst [vmem:[#allocation2 + $0x78] sm:$0xff] 0.0
      %36 = vst [vmem:[#allocation2 + $0x80] sm:$0xff] 0.0
      %37 = vst [vmem:[#allocation2 + $0x88] sm:$0xff] 0.0
      %38 = vst [vmem:[#allocation2 + $0x90] sm:$0xff] 0.0
      %39 = vst [vmem:[#allocation2 + $0x98] sm:$0xff] 0.0
      %40 = vst [vmem:[#allocation2 + $0xa0] sm:$0xff] 0.0
      %41 = vst [vmem:[#allocation2 + $0xa8] sm:$0xff] 0.0
      %42 = vst [vmem:[#allocation2 + $0xb0] sm:$0xff] 0.0
      %43 = vst [vmem:[#allocation2 + $0xb8] sm:$0xff] 0.0
      %44 = vst [vmem:[#allocation2 + $0xc0] sm:$0xff] 0.0
      %45 = vst [vmem:[#allocation2 + $0xc8] sm:$0xff] 0.0
      %46 = vst [vmem:[#allocation2 + $0xd0] sm:$0xff] 0.0
      %47 = vst [vmem:[#allocation2 + $0xd8] sm:$0xff] 0.0
      %48 = vst [vmem:[#allocation2 + $0xe0] sm:$0xff] 0.0
      %49 = vst [vmem:[#allocation2 + $0xe8] sm:$0xff] 0.0
      %50 = vst [vmem:[#allocation2 + $0xf0] sm:$0xff] 0.0
      %51 = vst [vmem:[#allocation2 + $0xf8] sm:$0xff] 0.0
      %52 = vst [vmem:[#allocation2 + $0x100] sm:$0xff] 0.0
      %53 = vst [vmem:[#allocation2 + $0x108] sm:$0xff] 0.0
      %54 = vst [vmem:[#allocation2 + $0x110] sm:$0xff] 0.0
      %55 = vst [vmem:[#allocation2 + $0x118] sm:$0xff] 0.0
      %56 = vst [vmem:[#allocation2 + $0x120] sm:$0xff] 0.0
      %57 = vst [vmem:[#allocation2 + $0x128] sm:$0xff] 0.0
      %58 = vst [vmem:[#allocation2 + $0x130] sm:$0xff] 0.0
      %59 = vst [vmem:[#allocation2 + $0x138] sm:$0xff] 0.0
      %60 = vst [vmem:[#allocation2 + $0x140] sm:$0xff] 0.0
      %61 = vst [vmem:[#allocation2 + $0x148] sm:$0xff] 0.0
      %62 = vst [vmem:[#allocation2 + $0x150] sm:$0xff] 0.0
      %63 = vst [vmem:[#allocation2 + $0x158] sm:$0xff] 0.0
      %64 = vst [vmem:[#allocation2 + $0x160] sm:$0xff] 0.0
      %65 = vst [vmem:[#allocation2 + $0x168] sm:$0xff] 0.0
      %66 = vst [vmem:[#allocation2 + $0x170] sm:$0xff] 0.0
      %67 = vst [vmem:[#allocation2 + $0x178] sm:$0xff] 0.0
      %68 = vst [vmem:[#allocation2 + $0x180] sm:$0xff] 0.0
      %69 = vst [vmem:[#allocation2 + $0x188] sm:$0xff] 0.0
      %70 = vst [vmem:[#allocation2 + $0x190] sm:$0xff] 0.0
      %71 = vst [vmem:[#allocation2 + $0x198] sm:$0xff] 0.0
      %72 = vst [vmem:[#allocation2 + $0x1a0] sm:$0xff] 0.0
      %73 = vst [vmem:[#allocation2 + $0x1a8] sm:$0xff] 0.0
      %74 = vst [vmem:[#allocation2 + $0x1b0] sm:$0xff] 0.0
      %75 = vst [vmem:[#allocation2 + $0x1b8] sm:$0xff] 0.0
      %76 = vst [vmem:[#allocation2 + $0x1c0] sm:$0xff] 0.0
      %77 = vst [vmem:[#allocation2 + $0x1c8] sm:$0xff] 0.0
      %78 = vst [vmem:[#allocation2 + $0x1d0] sm:$0xff] 0.0
      %79 = vst [vmem:[#allocation2 + $0x1d8] sm:$0xff] 0.0
      %80 = vst [vmem:[#allocation2 + $0x1e0] sm:$0xff] 0.0
      %81 = vst [vmem:[#allocation2 + $0x1e8] sm:$0xff] 0.0
      %82 = vst [vmem:[#allocation2 + $0x1f0] sm:$0xff] 0.0
      %83 = vst [vmem:[#allocation2 + $0x1f8] sm:$0xff] 0.0
      %84 = vst [vmem:[#allocation2 + $0x200] sm:$0xff] 0.0
      %85 = vst [vmem:[#allocation2 + $0x208] sm:$0xff] 0.0
      %86 = vst [vmem:[#allocation2 + $0x210] sm:$0xff] 0.0
      %87 = vst [vmem:[#allocation2 + $0x218] sm:$0xff] 0.0
      %88 = vst [vmem:[#allocation2 + $0x220] sm:$0xff] 0.0
      %89 = vst [vmem:[#allocation2 + $0x228] sm:$0xff] 0.0
      %90 = vst [vmem:[#allocation2 + $0x230] sm:$0xff] 0.0
      %91 = vst [vmem:[#allocation2 + $0x238] sm:$0xff] 0.0
      %92 = vst [vmem:[#allocation2 + $0x240] sm:$0xff] 0.0
      %93 = vst [vmem:[#allocation2 + $0x248] sm:$0xff] 0.0
      %94 = vst [vmem:[#allocation2 + $0x250] sm:$0xff] 0.0
      %95 = vst [vmem:[#allocation2 + $0x258] sm:$0xff] 0.0
      %96 = vst [vmem:[#allocation2 + $0x260] sm:$0xff] 0.0
      %97 = vst [vmem:[#allocation2 + $0x268] sm:$0xff] 0.0
      %98 = vst [vmem:[#allocation2 + $0x270] sm:$0xff] 0.0
      %99 = vst [vmem:[#allocation2 + $0x278] sm:$0xff] 0.0
      %100 = vst [vmem:[#allocation2 + $0x280] sm:$0xff] 0.0
      %101 = vst [vmem:[#allocation2 + $0x288] sm:$0xff] 0.0
      %102 = vst [vmem:[#allocation2 + $0x290] sm:$0xff] 0.0
      %103 = vst [vmem:[#allocation2 + $0x298] sm:$0xff] 0.0
      %104 = vst [vmem:[#allocation2 + $0x2a0] sm:$0xff] 0.0
      %105 = vst [vmem:[#allocation2 + $0x2a8] sm:$0xff] 0.0
      %106 = vst [vmem:[#allocation2 + $0x2b0] sm:$0xff] 0.0
      %107 = vst [vmem:[#allocation2 + $0x2b8] sm:$0xff] 0.0
      %108 = vst [vmem:[#allocation2 + $0x2c0] sm:$0xff] 0.0
      %109 = vst [vmem:[#allocation2 + $0x2c8] sm:$0xff] 0.0
      %110 = vst [vmem:[#allocation2 + $0x2d0] sm:$0xff] 0.0
      %111 = vst [vmem:[#allocation2 + $0x2d8] sm:$0xff] 0.0
      %112 = vst [vmem:[#allocation2 + $0x2e0] sm:$0xff] 0.0
      %113 = vst [vmem:[#allocation2 + $0x2e8] sm:$0xff] 0.0
      %114 = vst [vmem:[#allocation2 + $0x2f0] sm:$0xff] 0.0
      %115 = vst [vmem:[#allocation2 + $0x2f8] sm:$0xff] 0.0
    $region13: #{tpu_custom_call.1} parent=1 // pred_fallthru
      _
    %v116 = vld [vmem:[#allocation2] sm:$0xff]
    %v117 = vld [vmem:[#allocation2 + $0x8] sm:$0xff]
    %v118 = vld [vmem:[#allocation2 + $0x10] sm:$0xff]
    %v119 = vld [vmem:[#allocation2 + $0x18] sm:$0xff]
    %v120 = vld [vmem:[#allocation2 + $0x20] sm:$0xff]
    %v121 = vld [vmem:[#allocation2 + $0x28] sm:$0xff]
    %v122 = vld [vmem:[#allocation2 + $0x30] sm:$0xff]
    %v123 = vld [vmem:[#allocation2 + $0x38] sm:$0xff]
    %v124 = vld [vmem:[#allocation2 + $0x40] sm:$0xff]
    %v125 = vld [vmem:[#allocation2 + $0x48] sm:$0xff]
    %v126 = vld [vmem:[#allocation2 + $0x50] sm:$0xff]
    %v127 = vld [vmem:[#allocation2 + $0x58] sm:$0xff]
    %v128 = vld [vmem:[#allocation2 + $0x60] sm:$0xff]
    %v129 = vld [vmem:[#allocation2 + $0x68] sm:$0xff]
    %v130 = vld [vmem:[#allocation2 + $0x70] sm:$0xff]
    %v131 = vld [vmem:[#allocation2 + $0x78] sm:$0xff]
    %v132 = vld [vmem:[#allocation2 + $0x80] sm:$0xff]
    %v133 = vld [vmem:[#allocation2 + $0x88] sm:$0xff]
    %v134 = vld [vmem:[#allocation2 + $0x90] sm:$0xff]
    %v135 = vld [vmem:[#allocation2 + $0x98] sm:$0xff]
    %v136 = vld [vmem:[#allocation2 + $0xa0] sm:$0xff]
    %v137 = vld [vmem:[#allocation2 + $0xa8] sm:$0xff]
    %v138 = vld [vmem:[#allocation2 + $0xb0] sm:$0xff]
    %v139 = vld [vmem:[#allocation2 + $0xb8] sm:$0xff]
    %v140 = vld [vmem:[#allocation2 + $0xc0] sm:$0xff]
    %v141 = vld [vmem:[#allocation2 + $0xc8] sm:$0xff]
    %v142 = vld [vmem:[#allocation2 + $0xd0] sm:$0xff]
    %v143 = vld [vmem:[#allocation2 + $0xd8] sm:$0xff]
    %v144 = vld [vmem:[#allocation2 + $0xe0] sm:$0xff]
    %v145 = vld [vmem:[#allocation2 + $0xe8] sm:$0xff]
    %v146 = vld [vmem:[#allocation2 + $0xf0] sm:$0xff]
    %v147 = vld [vmem:[#allocation2 + $0xf8] sm:$0xff]
    %v148 = vld [vmem:[#allocation2 + $0x100] sm:$0xff]
    %v149 = vld [vmem:[#allocation2 + $0x108] sm:$0xff]
    %v150 = vld [vmem:[#allocation2 + $0x110] sm:$0xff]
    %v151 = vld [vmem:[#allocation2 + $0x118] sm:$0xff]
    %v152 = vld [vmem:[#allocation2 + $0x120] sm:$0xff]
    %v153 = vld [vmem:[#allocation2 + $0x128] sm:$0xff]
    %v154 = vld [vmem:[#allocation2 + $0x130] sm:$0xff]
    %v155 = vld [vmem:[#allocation2 + $0x138] sm:$0xff]
    %v156 = vld [vmem:[#allocation2 + $0x140] sm:$0xff]
    %v157 = vld [vmem:[#allocation2 + $0x148] sm:$0xff]
    %v158 = vld [vmem:[#allocation2 + $0x150] sm:$0xff]
    %v159 = vld [vmem:[#allocation2 + $0x158] sm:$0xff]
    %v160 = vld [vmem:[#allocation2 + $0x160] sm:$0xff]
    %v161 = vld [vmem:[#allocation2 + $0x168] sm:$0xff]
    %v162 = vld [vmem:[#allocation2 + $0x170] sm:$0xff]
    %v163 = vld [vmem:[#allocation2 + $0x178] sm:$0xff]
    %v164 = vld [vmem:[#allocation2 + $0x180] sm:$0xff]
    %v165 = vld [vmem:[#allocation2 + $0x188] sm:$0xff]
    %v166 = vld [vmem:[#allocation2 + $0x190] sm:$0xff]
    %v167 = vld [vmem:[#allocation2 + $0x198] sm:$0xff]
    %v168 = vld [vmem:[#allocation2 + $0x1a0] sm:$0xff]
    %v169 = vld [vmem:[#allocation2 + $0x1a8] sm:$0xff]
    %v170 = vld [vmem:[#allocation2 + $0x1b0] sm:$0xff]
    %v171 = vld [vmem:[#allocation2 + $0x1b8] sm:$0xff]
    %v172 = vld [vmem:[#allocation2 + $0x1c0] sm:$0xff]
    %v173 = vld [vmem:[#allocation2 + $0x1c8] sm:$0xff]
    %v174 = vld [vmem:[#allocation2 + $0x1d0] sm:$0xff]
    %v175 = vld [vmem:[#allocation2 + $0x1d8] sm:$0xff]
    %v176 = vld [vmem:[#allocation2 + $0x1e0] sm:$0xff]
    %v177 = vld [vmem:[#allocation2 + $0x1e8] sm:$0xff]
    %v178 = vld [vmem:[#allocation2 + $0x1f0] sm:$0xff]
    %v179 = vld [vmem:[#allocation2 + $0x1f8] sm:$0xff]
    %v180 = vld [vmem:[#allocation2 + $0x200] sm:$0xff]
    %v181 = vld [vmem:[#allocation2 + $0x208] sm:$0xff]
    %v182 = vld [vmem:[#allocation2 + $0x210] sm:$0xff]
    %v183 = vld [vmem:[#allocation2 + $0x218] sm:$0xff]
    %v184 = vld [vmem:[#allocation2 + $0x220] sm:$0xff]
    %v185 = vld [vmem:[#allocation2 + $0x228] sm:$0xff]
    %v186 = vld [vmem:[#allocation2 + $0x230] sm:$0xff]
    %v187 = vld [vmem:[#allocation2 + $0x238] sm:$0xff]
    %v188 = vld [vmem:[#allocation2 + $0x240] sm:$0xff]
    %v189 = vld [vmem:[#allocation2 + $0x248] sm:$0xff]
    %v190 = vld [vmem:[#allocation2 + $0x250] sm:$0xff]
    %v191 = vld [vmem:[#allocation2 + $0x258] sm:$0xff]
    %v192 = vld [vmem:[#allocation2 + $0x260] sm:$0xff]
    %v193 = vld [vmem:[#allocation2 + $0x268] sm:$0xff]
    %v194 = vld [vmem:[#allocation2 + $0x270] sm:$0xff]
    %v195 = vld [vmem:[#allocation2 + $0x278] sm:$0xff]
    %v196 = vld [vmem:[#allocation2 + $0x280] sm:$0xff]
    %v197 = vld [vmem:[#allocation2 + $0x288] sm:$0xff]
    %v198 = vld [vmem:[#allocation2 + $0x290] sm:$0xff]
    %v199 = vld [vmem:[#allocation2 + $0x298] sm:$0xff]
    %v200 = vld [vmem:[#allocation2 + $0x2a0] sm:$0xff]
    %v201 = vld [vmem:[#allocation2 + $0x2a8] sm:$0xff]
    %v202 = vld [vmem:[#allocation2 + $0x2b0] sm:$0xff]
    %v203 = vld [vmem:[#allocation2 + $0x2b8] sm:$0xff]
    %v204 = vld [vmem:[#allocation2 + $0x2c0] sm:$0xff]
    %v205 = vld [vmem:[#allocation2 + $0x2c8] sm:$0xff]
    %v206 = vld [vmem:[#allocation2 + $0x2d0] sm:$0xff]
    %v207 = vld [vmem:[#allocation2 + $0x2d8] sm:$0xff]
    %v208 = vld [vmem:[#allocation2 + $0x2e0] sm:$0xff]
    %v209 = vld [vmem:[#allocation2 + $0x2e8] sm:$0xff]
    %v210 = vld [vmem:[#allocation2 + $0x2f0] sm:$0xff]
    %v211 = vld [vmem:[#allocation2 + $0x2f8] sm:$0xff]
    %v212 = vld [vmem:[%s0] sm:$0xff]
    %v213 = vld [vmem:[%s0 + $0x8] sm:$0xff]
    %v214 = vld [vmem:[%s0 + $0x10] sm:$0xff]
    %v215 = vld [vmem:[%s0 + $0x18] sm:$0xff]
    %v216 = vld [vmem:[%s0 + $0x20] sm:$0xff]
    %v217 = vld [vmem:[%s0 + $0x28] sm:$0xff]
    %v218 = vld [vmem:[%s0 + $0x30] sm:$0xff]
    %v219 = vld [vmem:[%s0 + $0x38] sm:$0xff]
    %v220 = vld [vmem:[%s0 + $0x40] sm:$0xff]
    %v221 = vld [vmem:[%s0 + $0x48] sm:$0xff]
    %v222 = vld [vmem:[%s0 + $0x50] sm:$0xff]
    %v223 = vld [vmem:[%s0 + $0x58] sm:$0xff]
    %v224 = vld [vmem:[%s0 + $0x60] sm:$0xff]
    %v225 = vld [vmem:[%s0 + $0x68] sm:$0xff]
    %v226 = vld [vmem:[%s0 + $0x70] sm:$0xff]
    %v227 = vld [vmem:[%s0 + $0x78] sm:$0xff]
    %v228 = vld [vmem:[%s0 + $0x80] sm:$0xff]
    %v229 = vld [vmem:[%s0 + $0x88] sm:$0xff]
    %v230 = vld [vmem:[%s0 + $0x90] sm:$0xff]
    %v231 = vld [vmem:[%s0 + $0x98] sm:$0xff]
    %v232 = vld [vmem:[%s0 + $0xa0] sm:$0xff]
    %v233 = vld [vmem:[%s0 + $0xa8] sm:$0xff]
    %v234 = vld [vmem:[%s0 + $0xb0] sm:$0xff]
    %v235 = vld [vmem:[%s0 + $0xb8] sm:$0xff]
    %v236 = vld [vmem:[%s0 + $0xc0] sm:$0xff]
    %v237 = vld [vmem:[%s0 + $0xc8] sm:$0xff]
    %v238 = vld [vmem:[%s0 + $0xd0] sm:$0xff]
    %v239 = vld [vmem:[%s0 + $0xd8] sm:$0xff]
    %v240 = vld [vmem:[%s0 + $0xe0] sm:$0xff]
    %v241 = vld [vmem:[%s0 + $0xe8] sm:$0xff]
    %v242 = vld [vmem:[%s0 + $0xf0] sm:$0xff]
    %v243 = vld [vmem:[%s0 + $0xf8] sm:$0xff]
    %v244 = vld [vmem:[%s1] sm:$0xff]
    %v245 = vld [vmem:[%s1 + $0x8] sm:$0xff]
    %v246 = vld [vmem:[%s1 + $0x10] sm:$0xff]
    %v247 = vld [vmem:[%s1 + $0x18] sm:$0xff]
    %v248 = vld [vmem:[%s1 + $0x20] sm:$0xff]
    %v249 = vld [vmem:[%s1 + $0x28] sm:$0xff]
    %v250 = vld [vmem:[%s1 + $0x30] sm:$0xff]
    %v251 = vld [vmem:[%s1 + $0x38] sm:$0xff]
    %v252 = vld [vmem:[%s1 + $0x40] sm:$0xff]
    %v253 = vld [vmem:[%s1 + $0x48] sm:$0xff]
    %v254 = vld [vmem:[%s1 + $0x50] sm:$0xff]
    %v255 = vld [vmem:[%s1 + $0x58] sm:$0xff]
    %v256 = vld [vmem:[%s1 + $0x60] sm:$0xff]
    %v257 = vld [vmem:[%s1 + $0x68] sm:$0xff]
    %v258 = vld [vmem:[%s1 + $0x70] sm:$0xff]
    %v259 = vld [vmem:[%s1 + $0x78] sm:$0xff]
    %v260 = vld [vmem:[%s1 + $0x80] sm:$0xff]
    %v261 = vld [vmem:[%s1 + $0x88] sm:$0xff]
    %v262 = vld [vmem:[%s1 + $0x90] sm:$0xff]
    %v263 = vld [vmem:[%s1 + $0x98] sm:$0xff]
    %v264 = vld [vmem:[%s1 + $0xa0] sm:$0xff]
    %v265 = vld [vmem:[%s1 + $0xa8] sm:$0xff]
    %v266 = vld [vmem:[%s1 + $0xb0] sm:$0xff]
    %v267 = vld [vmem:[%s1 + $0xb8] sm:$0xff]
    %vm268 = vcmask 523264
    %v270 = vsel %vm268, %v212, 0
    %v273 = vsel %vm268, %v213, 0
    %v276 = vsel %vm268, %v214, 0
    %v279 = vsel %vm268, %v215, 0
    %v282 = vsel %vm268, %v216, 0
    %v285 = vsel %vm268, %v217, 0
    %v288 = vsel %vm268, %v218, 0
    %v291 = vsel %vm268, %v219, 0
    %v294 = vsel %vm268, %v220, 0
    %v297 = vsel %vm268, %v221, 0
    %v300 = vsel %vm268, %v222, 0
    %v303 = vsel %vm268, %v223, 0
    %v306 = vsel %vm268, %v224, 0
    %v309 = vsel %vm268, %v225, 0
    %v312 = vsel %vm268, %v226, 0
    %v315 = vsel %vm268, %v227, 0
    %v318 = vsel %vm268, %v228, 0
    %v321 = vsel %vm268, %v229, 0
    %v324 = vsel %vm268, %v230, 0
    %v327 = vsel %vm268, %v231, 0
    %v330 = vsel %vm268, %v232, 0
    %v333 = vsel %vm268, %v233, 0
    %v336 = vsel %vm268, %v234, 0
    %v339 = vsel %vm268, %v235, 0
    %v342 = vsel %vm268, %v236, 0
    %v345 = vsel %vm268, %v237, 0
    %v348 = vsel %vm268, %v238, 0
    %v351 = vsel %vm268, %v239, 0
    %v354 = vsel %vm268, %v240, 0
    %v357 = vsel %vm268, %v241, 0
    %v360 = vsel %vm268, %v242, 0
    %v363 = vsel %vm268, %v243, 0
    %365 = vmatprep.subr.mxu0 0.0
    %366 = vmatpush1.msra.mxu0 0.0
    %367 = vmatprep.subr.mxu0 0.0
    %368 = vmatpush1.msra.mxu0 0.0
    %369 = vmatprep.subr.mxu0 0.0
    %370 = vmatpush1.msra.mxu0 0.0
    %371 = vmatprep.subr.mxu0 0.0
    %372 = vmatpush1.msra.mxu0 0.0
    %373 = vmatprep.subr.mxu0 0.0
    %374 = vmatpush1.msra.mxu0 0.0
    %375 = vmatprep.subr.mxu0 0.0
    %376 = vmatpush1.msra.mxu0 0.0
    %377 = vmatprep.subr.mxu0 0.0
    %378 = vmatpush1.msra.mxu0 0.0
    %379 = vmatprep.subr.mxu0 0.0
    %380 = vmatpush1.msra.mxu0 0.0
    %381 = vmatprep.subr.mxu0 %v266
    %382 = vmatpush1.msra.mxu0 %v265
    %383 = vmatprep.subr.mxu0 %v263
    %384 = vmatpush1.msra.mxu0 %v262
    %385 = vmatprep.subr.mxu0 %v260
    %386 = vmatpush1.msra.mxu0 %v259
    %387 = vmatprep.subr.mxu0 %v257
    %388 = vmatpush1.msra.mxu0 %v256
    %389 = vmatprep.subr.mxu0 %v254
    %390 = vmatpush1.msra.mxu0 %v253
    %391 = vmatprep.subr.mxu0 %v251
    %392 = vmatpush1.msra.mxu0 %v250
    %393 = vmatprep.subr.mxu0 %v248
    %394 = vmatpush1.msra.mxu0 %v247
    %395 = vmatprep.subr.mxu0 %v245
    %396 = vmatpush1.msra.mxu0 %v244
    %397 = vmatprep.subr.mxu0 0.0
    %398 = vmatpush2.msra.mxu0 0.0
    %399 = vmatprep.subr.mxu0 0.0
    %400 = vmatpush2.msra.mxu0 0.0
    %401 = vmatprep.subr.mxu0 0.0
    %402 = vmatpush2.msra.mxu0 0.0
    %403 = vmatprep.subr.mxu0 0.0
    %404 = vmatpush2.msra.mxu0 0.0
    %405 = vmatprep.subr.mxu0 0.0
    %406 = vmatpush2.msra.mxu0 0.0
    %407 = vmatprep.subr.mxu0 0.0
    %408 = vmatpush2.msra.mxu0 0.0
    %409 = vmatprep.subr.mxu0 0.0
    %410 = vmatpush2.msra.mxu0 0.0
    %411 = vmatprep.subr.mxu0 0.0
    %412 = vmatpush2.msra.mxu0 0.0
    %413 = vmatprep.subr.mxu0 0.0
    %414 = vmatpush2.msra.mxu0 0.0
    %415 = vmatprep.subr.mxu0 0.0
    %416 = vmatpush2.msra.mxu0 0.0
    %417 = vmatprep.subr.mxu0 0.0
    %418 = vmatpush2.msra.mxu0 0.0
    %419 = vmatprep.subr.mxu0 0.0
    %420 = vmatpush2.msra.mxu0 0.0
    %421 = vmatprep.subr.mxu0 0.0
    %422 = vmatpush2.msra.mxu0 0.0
    %423 = vmatprep.subr.mxu0 0.0
    %424 = vmatpush2.msra.mxu0 0.0
    %425 = vmatprep.subr.mxu0 0.0
    %426 = vmatpush2.msra.mxu0 0.0
    %427 = vmatprep.subr.mxu0 0.0
    %428 = vmatpush2.msra.mxu0 0.0
    %429 = vmatprep.mubr.f32.mxu0 0.0
    %430 = vmatmul.mubr.f32.gmra.mxu0 %v270
    %v431 = vpop.f32.mrf.mxu0
    %v432 = vadd.f32 0.0, %v431
    %v433 = vpop.f32.mrf.mxu0
    %v434 = vadd.f32 0.0, %v433
    %435 = vmatprep.mubr.f32.mxu0 0.0
    %436 = vmatmul.mubr.f32.gmra.mxu0 %v273
    %v437 = vpop.f32.mrf.mxu0
    %v438 = vadd.f32 0.0, %v437
    %v439 = vpop.f32.mrf.mxu0
    %v440 = vadd.f32 0.0, %v439
    %441 = vmatprep.mubr.f32.mxu0 0.0
    %442 = vmatmul.mubr.f32.gmra.mxu0 %v276
    %v443 = vpop.f32.mrf.mxu0
    %v444 = vadd.f32 0.0, %v443
    %v445 = vpop.f32.mrf.mxu0
    %v446 = vadd.f32 0.0, %v445
    %447 = vmatprep.mubr.f32.mxu0 0.0
    %448 = vmatmul.mubr.f32.gmra.mxu0 %v279
    %v449 = vpop.f32.mrf.mxu0
    %v450 = vadd.f32 0.0, %v449
    %v451 = vpop.f32.mrf.mxu0
    %v452 = vadd.f32 0.0, %v451
    %453 = vmatprep.mubr.f32.mxu0 0.0
    %454 = vmatmul.mubr.f32.gmra.mxu0 %v282
    %v455 = vpop.f32.mrf.mxu0
    %v456 = vadd.f32 0.0, %v455
    %v457 = vpop.f32.mrf.mxu0
    %v458 = vadd.f32 0.0, %v457
    %459 = vmatprep.mubr.f32.mxu0 0.0
    %460 = vmatmul.mubr.f32.gmra.mxu0 %v285
    %v461 = vpop.f32.mrf.mxu0
    %v462 = vadd.f32 0.0, %v461
    %v463 = vpop.f32.mrf.mxu0
    %v464 = vadd.f32 0.0, %v463
    %465 = vmatprep.mubr.f32.mxu0 0.0
    %466 = vmatmul.mubr.f32.gmra.mxu0 %v288
    %v467 = vpop.f32.mrf.mxu0
    %v468 = vadd.f32 0.0, %v467
    %v469 = vpop.f32.mrf.mxu0
    %v470 = vadd.f32 0.0, %v469
    %471 = vmatprep.mubr.f32.mxu0 0.0
    %472 = vmatmul.mubr.f32.gmra.mxu0 %v291
    %v473 = vpop.f32.mrf.mxu0
    %v474 = vadd.f32 0.0, %v473
    %v475 = vpop.f32.mrf.mxu0
    %v476 = vadd.f32 0.0, %v475
    %477 = vmatprep.mubr.f32.mxu0 0.0
    %478 = vmatmul.mubr.f32.gmra.mxu0 %v294
    %v479 = vpop.f32.mrf.mxu0
    %v480 = vadd.f32 0.0, %v479
    %v481 = vpop.f32.mrf.mxu0
    %v482 = vadd.f32 0.0, %v481
    %483 = vmatprep.mubr.f32.mxu0 0.0
    %484 = vmatmul.mubr.f32.gmra.mxu0 %v297
    %v485 = vpop.f32.mrf.mxu0
    %v486 = vadd.f32 0.0, %v485
    %v487 = vpop.f32.mrf.mxu0
    %v488 = vadd.f32 0.0, %v487
    %489 = vmatprep.mubr.f32.mxu0 0.0
    %490 = vmatmul.mubr.f32.gmra.mxu0 %v300
    %v491 = vpop.f32.mrf.mxu0
    %v492 = vadd.f32 0.0, %v491
    %v493 = vpop.f32.mrf.mxu0
    %v494 = vadd.f32 0.0, %v493
    %495 = vmatprep.mubr.f32.mxu0 0.0
    %496 = vmatmul.mubr.f32.gmra.mxu0 %v303
    %v497 = vpop.f32.mrf.mxu0
    %v498 = vadd.f32 0.0, %v497
    %v499 = vpop.f32.mrf.mxu0
    %v500 = vadd.f32 0.0, %v499
    %501 = vmatprep.mubr.f32.mxu0 0.0
    %502 = vmatmul.mubr.f32.gmra.mxu0 %v306
    %v503 = vpop.f32.mrf.mxu0
    %v504 = vadd.f32 0.0, %v503
    %v505 = vpop.f32.mrf.mxu0
    %v506 = vadd.f32 0.0, %v505
    %507 = vmatprep.mubr.f32.mxu0 0.0
    %508 = vmatmul.mubr.f32.gmra.mxu0 %v309
    %v509 = vpop.f32.mrf.mxu0
    %v510 = vadd.f32 0.0, %v509
    %v511 = vpop.f32.mrf.mxu0
    %v512 = vadd.f32 0.0, %v511
    %513 = vmatprep.mubr.f32.mxu0 0.0
    %514 = vmatmul.mubr.f32.gmra.mxu0 %v312
    %v515 = vpop.f32.mrf.mxu0
    %v516 = vadd.f32 0.0, %v515
    %v517 = vpop.f32.mrf.mxu0
    %v518 = vadd.f32 0.0, %v517
    %519 = vmatprep.mubr.f32.mxu0 0.0
    %520 = vmatmul.mubr.f32.gmra.mxu0 %v315
    %v521 = vpop.f32.mrf.mxu0
    %v522 = vadd.f32 0.0, %v521
    %v523 = vpop.f32.mrf.mxu0
    %v524 = vadd.f32 0.0, %v523
    %525 = vmatprep.mubr.f32.mxu0 0.0
    %526 = vmatmul.mubr.f32.gmra.mxu0 %v318
    %v527 = vpop.f32.mrf.mxu0
    %v528 = vadd.f32 0.0, %v527
    %v529 = vpop.f32.mrf.mxu0
    %v530 = vadd.f32 0.0, %v529
    %531 = vmatprep.mubr.f32.mxu0 0.0
    %532 = vmatmul.mubr.f32.gmra.mxu0 %v321
    %v533 = vpop.f32.mrf.mxu0
    %v534 = vadd.f32 0.0, %v533
    %v535 = vpop.f32.mrf.mxu0
    %v536 = vadd.f32 0.0, %v535
    %537 = vmatprep.mubr.f32.mxu0 0.0
    %538 = vmatmul.mubr.f32.gmra.mxu0 %v324
    %v539 = vpop.f32.mrf.mxu0
    %v540 = vadd.f32 0.0, %v539
    %v541 = vpop.f32.mrf.mxu0
    %v542 = vadd.f32 0.0, %v541
    %543 = vmatprep.mubr.f32.mxu0 0.0
    %544 = vmatmul.mubr.f32.gmra.mxu0 %v327
    %v545 = vpop.f32.mrf.mxu0
    %v546 = vadd.f32 0.0, %v545
    %v547 = vpop.f32.mrf.mxu0
    %v548 = vadd.f32 0.0, %v547
    %549 = vmatprep.mubr.f32.mxu0 0.0
    %550 = vmatmul.mubr.f32.gmra.mxu0 %v330
    %v551 = vpop.f32.mrf.mxu0
    %v552 = vadd.f32 0.0, %v551
    %v553 = vpop.f32.mrf.mxu0
    %v554 = vadd.f32 0.0, %v553
    %555 = vmatprep.mubr.f32.mxu0 0.0
    %556 = vmatmul.mubr.f32.gmra.mxu0 %v333
    %v557 = vpop.f32.mrf.mxu0
    %v558 = vadd.f32 0.0, %v557
    %v559 = vpop.f32.mrf.mxu0
    %v560 = vadd.f32 0.0, %v559
    %561 = vmatprep.mubr.f32.mxu0 0.0
    %562 = vmatmul.mubr.f32.gmra.mxu0 %v336
    %v563 = vpop.f32.mrf.mxu0
    %v564 = vadd.f32 0.0, %v563
    %v565 = vpop.f32.mrf.mxu0
    %v566 = vadd.f32 0.0, %v565
    %567 = vmatprep.mubr.f32.mxu0 0.0
    %568 = vmatmul.mubr.f32.gmra.mxu0 %v339
    %v569 = vpop.f32.mrf.mxu0
    %v570 = vadd.f32 0.0, %v569
    %v571 = vpop.f32.mrf.mxu0
    %v572 = vadd.f32 0.0, %v571
    %573 = vmatprep.mubr.f32.mxu0 0.0
    %574 = vmatmul.mubr.f32.gmra.mxu0 %v342
    %v575 = vpop.f32.mrf.mxu0
    %v576 = vadd.f32 0.0, %v575
    %v577 = vpop.f32.mrf.mxu0
    %v578 = vadd.f32 0.0, %v577
    %579 = vmatprep.mubr.f32.mxu0 0.0
    %580 = vmatmul.mubr.f32.gmra.mxu0 %v345
    %v581 = vpop.f32.mrf.mxu0
    %v582 = vadd.f32 0.0, %v581
    %v583 = vpop.f32.mrf.mxu0
    %v584 = vadd.f32 0.0, %v583
    %585 = vmatprep.mubr.f32.mxu0 0.0
    %586 = vmatmul.mubr.f32.gmra.mxu0 %v348
    %v587 = vpop.f32.mrf.mxu0
    %v588 = vadd.f32 0.0, %v587
    %v589 = vpop.f32.mrf.mxu0
    %v590 = vadd.f32 0.0, %v589
    %591 = vmatprep.mubr.f32.mxu0 0.0
    %592 = vmatmul.mubr.f32.gmra.mxu0 %v351
    %v593 = vpop.f32.mrf.mxu0
    %v594 = vadd.f32 0.0, %v593
    %v595 = vpop.f32.mrf.mxu0
    %v596 = vadd.f32 0.0, %v595
    %597 = vmatprep.mubr.f32.mxu0 0.0
    %598 = vmatmul.mubr.f32.gmra.mxu0 %v354
    %v599 = vpop.f32.mrf.mxu0
    %v600 = vadd.f32 0.0, %v599
    %v601 = vpop.f32.mrf.mxu0
    %v602 = vadd.f32 0.0, %v601
    %603 = vmatprep.mubr.f32.mxu0 0.0
    %604 = vmatmul.mubr.f32.gmra.mxu0 %v357
    %v605 = vpop.f32.mrf.mxu0
    %v606 = vadd.f32 0.0, %v605
    %v607 = vpop.f32.mrf.mxu0
    %v608 = vadd.f32 0.0, %v607
    %609 = vmatprep.mubr.f32.mxu0 0.0
    %610 = vmatmul.mubr.f32.gmra.mxu0 %v360
    %v611 = vpop.f32.mrf.mxu0
    %v612 = vadd.f32 0.0, %v611
    %v613 = vpop.f32.mrf.mxu0
    %v614 = vadd.f32 0.0, %v613
    %615 = vmatprep.mubr.f32.mxu0 0.0
    %616 = vmatmul.mubr.f32.gmra.mxu0 %v363
    %v617 = vpop.f32.mrf.mxu0
    %v618 = vadd.f32 0.0, %v617
    %v619 = vpop.f32.mrf.mxu0
    %v620 = vadd.f32 0.0, %v619
    %621 = vdwg.mxu0
    %622 = vmatprep.subr.mxu0 0.0
    %623 = vmatpush1.msra.mxu0 0.0
    %624 = vmatprep.subr.mxu0 0.0
    %625 = vmatpush1.msra.mxu0 0.0
    %626 = vmatprep.subr.mxu0 0.0
    %627 = vmatpush1.msra.mxu0 0.0
    %628 = vmatprep.subr.mxu0 0.0
    %629 = vmatpush1.msra.mxu0 0.0
    %630 = vmatprep.subr.mxu0 0.0
    %631 = vmatpush1.msra.mxu0 0.0
    %632 = vmatprep.subr.mxu0 0.0
    %633 = vmatpush1.msra.mxu0 0.0
    %634 = vmatprep.subr.mxu0 0.0
    %635 = vmatpush1.msra.mxu0 0.0
    %636 = vmatprep.subr.mxu0 0.0
    %637 = vmatpush1.msra.mxu0 0.0
    %638 = vmatprep.subr.mxu0 0.0
    %639 = vmatpush1.msra.mxu0 %v267
    %640 = vmatprep.subr.mxu0 0.0
    %641 = vmatpush1.msra.mxu0 %v264
    %642 = vmatprep.subr.mxu0 0.0
    %643 = vmatpush1.msra.mxu0 %v261
    %644 = vmatprep.subr.mxu0 0.0
    %645 = vmatpush1.msra.mxu0 %v258
    %646 = vmatprep.subr.mxu0 0.0
    %647 = vmatpush1.msra.mxu0 %v255
    %648 = vmatprep.subr.mxu0 0.0
    %649 = vmatpush1.msra.mxu0 %v252
    %650 = vmatprep.subr.mxu0 0.0
    %651 = vmatpush1.msra.mxu0 %v249
    %652 = vmatprep.subr.mxu0 0.0
    %653 = vmatpush1.msra.mxu0 %v246
    %654 = vmatprep.subr.mxu0 0.0
    %655 = vmatpush2.msra.mxu0 0.0
    %656 = vmatprep.subr.mxu0 0.0
    %657 = vmatpush2.msra.mxu0 0.0
    %658 = vmatprep.subr.mxu0 0.0
    %659 = vmatpush2.msra.mxu0 0.0
    %660 = vmatprep.subr.mxu0 0.0
    %661 = vmatpush2.msra.mxu0 0.0
    %662 = vmatprep.subr.mxu0 0.0
    %663 = vmatpush2.msra.mxu0 0.0
    %664 = vmatprep.subr.mxu0 0.0
    %665 = vmatpush2.msra.mxu0 0.0
    %666 = vmatprep.subr.mxu0 0.0
    %667 = vmatpush2.msra.mxu0 0.0
    %668 = vmatprep.subr.mxu0 0.0
    %669 = vmatpush2.msra.mxu0 0.0
    %670 = vmatprep.subr.mxu0 0.0
    %671 = vmatpush2.msra.mxu0 0.0
    %672 = vmatprep.subr.mxu0 0.0
    %673 = vmatpush2.msra.mxu0 0.0
    %674 = vmatprep.subr.mxu0 0.0
    %675 = vmatpush2.msra.mxu0 0.0
    %676 = vmatprep.subr.mxu0 0.0
    %677 = vmatpush2.msra.mxu0 0.0
    %678 = vmatprep.subr.mxu0 0.0
    %679 = vmatpush2.msra.mxu0 0.0
    %680 = vmatprep.subr.mxu0 0.0
    %681 = vmatpush2.msra.mxu0 0.0
    %682 = vmatprep.subr.mxu0 0.0
    %683 = vmatpush2.msra.mxu0 0.0
    %684 = vmatprep.subr.mxu0 0.0
    %685 = vmatpush2.msra.mxu0 0.0
    %686 = vmatprep.mubr.f32.mxu0 0.0
    %687 = vmatmul.mubr.f32.gmra.mxu0 %v270
    %v688 = vpop.f32.mrf.mxu0
    %v689 = vadd.f32 0.0, %v688
    %v690 = vpop.f32.mrf.mxu0
    %691 = vmatprep.mubr.f32.mxu0 0.0
    %692 = vmatmul.mubr.f32.gmra.mxu0 %v273
    %v693 = vpop.f32.mrf.mxu0
    %v694 = vadd.f32 0.0, %v693
    %v695 = vpop.f32.mrf.mxu0
    %696 = vmatprep.mubr.f32.mxu0 0.0
    %697 = vmatmul.mubr.f32.gmra.mxu0 %v276
    %v698 = vpop.f32.mrf.mxu0
    %v699 = vadd.f32 0.0, %v698
    %v700 = vpop.f32.mrf.mxu0
    %701 = vmatprep.mubr.f32.mxu0 0.0
    %702 = vmatmul.mubr.f32.gmra.mxu0 %v279
    %v703 = vpop.f32.mrf.mxu0
    %v704 = vadd.f32 0.0, %v703
    %v705 = vpop.f32.mrf.mxu0
    %706 = vmatprep.mubr.f32.mxu0 0.0
    %707 = vmatmul.mubr.f32.gmra.mxu0 %v282
    %v708 = vpop.f32.mrf.mxu0
    %v709 = vadd.f32 0.0, %v708
    %v710 = vpop.f32.mrf.mxu0
    %711 = vmatprep.mubr.f32.mxu0 0.0
    %712 = vmatmul.mubr.f32.gmra.mxu0 %v285
    %v713 = vpop.f32.mrf.mxu0
    %v714 = vadd.f32 0.0, %v713
    %v715 = vpop.f32.mrf.mxu0
    %716 = vmatprep.mubr.f32.mxu0 0.0
    %717 = vmatmul.mubr.f32.gmra.mxu0 %v288
    %v718 = vpop.f32.mrf.mxu0
    %v719 = vadd.f32 0.0, %v718
    %v720 = vpop.f32.mrf.mxu0
    %721 = vmatprep.mubr.f32.mxu0 0.0
    %722 = vmatmul.mubr.f32.gmra.mxu0 %v291
    %v723 = vpop.f32.mrf.mxu0
    %v724 = vadd.f32 0.0, %v723
    %v725 = vpop.f32.mrf.mxu0
    %726 = vmatprep.mubr.f32.mxu0 0.0
    %727 = vmatmul.mubr.f32.gmra.mxu0 %v294
    %v728 = vpop.f32.mrf.mxu0
    %v729 = vadd.f32 0.0, %v728
    %v730 = vpop.f32.mrf.mxu0
    %731 = vmatprep.mubr.f32.mxu0 0.0
    %732 = vmatmul.mubr.f32.gmra.mxu0 %v297
    %v733 = vpop.f32.mrf.mxu0
    %v734 = vadd.f32 0.0, %v733
    %v735 = vpop.f32.mrf.mxu0
    %736 = vmatprep.mubr.f32.mxu0 0.0
    %737 = vmatmul.mubr.f32.gmra.mxu0 %v300
    %v738 = vpop.f32.mrf.mxu0
    %v739 = vadd.f32 0.0, %v738
    %v740 = vpop.f32.mrf.mxu0
    %741 = vmatprep.mubr.f32.mxu0 0.0
    %742 = vmatmul.mubr.f32.gmra.mxu0 %v303
    %v743 = vpop.f32.mrf.mxu0
    %v744 = vadd.f32 0.0, %v743
    %v745 = vpop.f32.mrf.mxu0
    %746 = vmatprep.mubr.f32.mxu0 0.0
    %747 = vmatmul.mubr.f32.gmra.mxu0 %v306
    %v748 = vpop.f32.mrf.mxu0
    %v749 = vadd.f32 0.0, %v748
    %v750 = vpop.f32.mrf.mxu0
    %751 = vmatprep.mubr.f32.mxu0 0.0
    %752 = vmatmul.mubr.f32.gmra.mxu0 %v309
    %v753 = vpop.f32.mrf.mxu0
    %v754 = vadd.f32 0.0, %v753
    %v755 = vpop.f32.mrf.mxu0
    %756 = vmatprep.mubr.f32.mxu0 0.0
    %757 = vmatmul.mubr.f32.gmra.mxu0 %v312
    %v758 = vpop.f32.mrf.mxu0
    %v759 = vadd.f32 0.0, %v758
    %v760 = vpop.f32.mrf.mxu0
    %761 = vmatprep.mubr.f32.mxu0 0.0
    %762 = vmatmul.mubr.f32.gmra.mxu0 %v315
    %v763 = vpop.f32.mrf.mxu0
    %v764 = vadd.f32 0.0, %v763
    %v765 = vpop.f32.mrf.mxu0
    %766 = vmatprep.mubr.f32.mxu0 0.0
    %767 = vmatmul.mubr.f32.gmra.mxu0 %v318
    %v768 = vpop.f32.mrf.mxu0
    %v769 = vadd.f32 0.0, %v768
    %v770 = vpop.f32.mrf.mxu0
    %771 = vmatprep.mubr.f32.mxu0 0.0
    %772 = vmatmul.mubr.f32.gmra.mxu0 %v321
    %v773 = vpop.f32.mrf.mxu0
    %v774 = vadd.f32 0.0, %v773
    %v775 = vpop.f32.mrf.mxu0
    %776 = vmatprep.mubr.f32.mxu0 0.0
    %777 = vmatmul.mubr.f32.gmra.mxu0 %v324
    %v778 = vpop.f32.mrf.mxu0
    %v779 = vadd.f32 0.0, %v778
    %v780 = vpop.f32.mrf.mxu0
    %781 = vmatprep.mubr.f32.mxu0 0.0
    %782 = vmatmul.mubr.f32.gmra.mxu0 %v327
    %v783 = vpop.f32.mrf.mxu0
    %v784 = vadd.f32 0.0, %v783
    %v785 = vpop.f32.mrf.mxu0
    %786 = vmatprep.mubr.f32.mxu0 0.0
    %787 = vmatmul.mubr.f32.gmra.mxu0 %v330
    %v788 = vpop.f32.mrf.mxu0
    %v789 = vadd.f32 0.0, %v788
    %v790 = vpop.f32.mrf.mxu0
    %791 = vmatprep.mubr.f32.mxu0 0.0
    %792 = vmatmul.mubr.f32.gmra.mxu0 %v333
    %v793 = vpop.f32.mrf.mxu0
    %v794 = vadd.f32 0.0, %v793
    %v795 = vpop.f32.mrf.mxu0
    %796 = vmatprep.mubr.f32.mxu0 0.0
    %797 = vmatmul.mubr.f32.gmra.mxu0 %v336
    %v798 = vpop.f32.mrf.mxu0
    %v799 = vadd.f32 0.0, %v798
    %v800 = vpop.f32.mrf.mxu0
    %801 = vmatprep.mubr.f32.mxu0 0.0
    %802 = vmatmul.mubr.f32.gmra.mxu0 %v339
    %v803 = vpop.f32.mrf.mxu0
    %v804 = vadd.f32 0.0, %v803
    %v805 = vpop.f32.mrf.mxu0
    %806 = vmatprep.mubr.f32.mxu0 0.0
    %807 = vmatmul.mubr.f32.gmra.mxu0 %v342
    %v808 = vpop.f32.mrf.mxu0
    %v809 = vadd.f32 0.0, %v808
    %v810 = vpop.f32.mrf.mxu0
    %811 = vmatprep.mubr.f32.mxu0 0.0
    %812 = vmatmul.mubr.f32.gmra.mxu0 %v345
    %v813 = vpop.f32.mrf.mxu0
    %v814 = vadd.f32 0.0, %v813
    %v815 = vpop.f32.mrf.mxu0
    %816 = vmatprep.mubr.f32.mxu0 0.0
    %817 = vmatmul.mubr.f32.gmra.mxu0 %v348
    %v818 = vpop.f32.mrf.mxu0
    %v819 = vadd.f32 0.0, %v818
    %v820 = vpop.f32.mrf.mxu0
    %821 = vmatprep.mubr.f32.mxu0 0.0
    %822 = vmatmul.mubr.f32.gmra.mxu0 %v351
    %v823 = vpop.f32.mrf.mxu0
    %v824 = vadd.f32 0.0, %v823
    %v825 = vpop.f32.mrf.mxu0
    %826 = vmatprep.mubr.f32.mxu0 0.0
    %827 = vmatmul.mubr.f32.gmra.mxu0 %v354
    %v828 = vpop.f32.mrf.mxu0
    %v829 = vadd.f32 0.0, %v828
    %v830 = vpop.f32.mrf.mxu0
    %831 = vmatprep.mubr.f32.mxu0 0.0
    %832 = vmatmul.mubr.f32.gmra.mxu0 %v357
    %v833 = vpop.f32.mrf.mxu0
    %v834 = vadd.f32 0.0, %v833
    %v835 = vpop.f32.mrf.mxu0
    %836 = vmatprep.mubr.f32.mxu0 0.0
    %837 = vmatmul.mubr.f32.gmra.mxu0 %v360
    %v838 = vpop.f32.mrf.mxu0
    %v839 = vadd.f32 0.0, %v838
    %v840 = vpop.f32.mrf.mxu0
    %841 = vmatprep.mubr.f32.mxu0 0.0
    %842 = vmatmul.mubr.f32.gmra.mxu0 %v363
    %v843 = vpop.f32.mrf.mxu0
    %v844 = vadd.f32 0.0, %v843
    %v845 = vpop.f32.mrf.mxu0
    %846 = vdwg.mxu0
    %v847 = vadd.f32 %v116, %v432
    %v848 = vadd.f32 %v117, %v434
    %v849 = vadd.f32 %v118, %v689
    %v850 = vadd.f32 %v119, %v438
    %v851 = vadd.f32 %v120, %v440
    %v852 = vadd.f32 %v121, %v694
    %v853 = vadd.f32 %v122, %v444
    %v854 = vadd.f32 %v123, %v446
    %v855 = vadd.f32 %v124, %v699
    %v856 = vadd.f32 %v125, %v450
    %v857 = vadd.f32 %v126, %v452
    %v858 = vadd.f32 %v127, %v704
    %v859 = vadd.f32 %v128, %v456
    %v860 = vadd.f32 %v129, %v458
    %v861 = vadd.f32 %v130, %v709
    %v862 = vadd.f32 %v131, %v462
    %v863 = vadd.f32 %v132, %v464
    %v864 = vadd.f32 %v133, %v714
    %v865 = vadd.f32 %v134, %v468
    %v866 = vadd.f32 %v135, %v470
    %v867 = vadd.f32 %v136, %v719
    %v868 = vadd.f32 %v137, %v474
    %v869 = vadd.f32 %v138, %v476
    %v870 = vadd.f32 %v139, %v724
    %v871 = vadd.f32 %v140, %v480
    %v872 = vadd.f32 %v141, %v482
    %v873 = vadd.f32 %v142, %v729
    %v874 = vadd.f32 %v143, %v486
    %v875 = vadd.f32 %v144, %v488
    %v876 = vadd.f32 %v145, %v734
    %v877 = vadd.f32 %v146, %v492
    %v878 = vadd.f32 %v147, %v494
    %v879 = vadd.f32 %v148, %v739
    %v880 = vadd.f32 %v149, %v498
    %v881 = vadd.f32 %v150, %v500
    %v882 = vadd.f32 %v151, %v744
    %v883 = vadd.f32 %v152, %v504
    %v884 = vadd.f32 %v153, %v506
    %v885 = vadd.f32 %v154, %v749
    %v886 = vadd.f32 %v155, %v510
    %v887 = vadd.f32 %v156, %v512
    %v888 = vadd.f32 %v157, %v754
    %v889 = vadd.f32 %v158, %v516
    %v890 = vadd.f32 %v159, %v518
    %v891 = vadd.f32 %v160, %v759
    %v892 = vadd.f32 %v161, %v522
    %v893 = vadd.f32 %v162, %v524
    %v894 = vadd.f32 %v163, %v764
    %v895 = vadd.f32 %v164, %v528
    %v896 = vadd.f32 %v165, %v530
    %v897 = vadd.f32 %v166, %v769
    %v898 = vadd.f32 %v167, %v534
    %v899 = vadd.f32 %v168, %v536
    %v900 = vadd.f32 %v169, %v774
    %v901 = vadd.f32 %v170, %v540
    %v902 = vadd.f32 %v171, %v542
    %v903 = vadd.f32 %v172, %v779
    %v904 = vadd.f32 %v173, %v546
    %v905 = vadd.f32 %v174, %v548
    %v906 = vadd.f32 %v175, %v784
    %v907 = vadd.f32 %v176, %v552
    %v908 = vadd.f32 %v177, %v554
    %v909 = vadd.f32 %v178, %v789
    %v910 = vadd.f32 %v179, %v558
    %v911 = vadd.f32 %v180, %v560
    %v912 = vadd.f32 %v181, %v794
    %v913 = vadd.f32 %v182, %v564
    %v914 = vadd.f32 %v183, %v566
    %v915 = vadd.f32 %v184, %v799
    %v916 = vadd.f32 %v185, %v570
    %v917 = vadd.f32 %v186, %v572
    %v918 = vadd.f32 %v187, %v804
    %v919 = vadd.f32 %v188, %v576
    %v920 = vadd.f32 %v189, %v578
    %v921 = vadd.f32 %v190, %v809
    %v922 = vadd.f32 %v191, %v582
    %v923 = vadd.f32 %v192, %v584
    %v924 = vadd.f32 %v193, %v814
    %v925 = vadd.f32 %v194, %v588
    %v926 = vadd.f32 %v195, %v590
    %v927 = vadd.f32 %v196, %v819
    %v928 = vadd.f32 %v197, %v594
    %v929 = vadd.f32 %v198, %v596
    %v930 = vadd.f32 %v199, %v824
    %v931 = vadd.f32 %v200, %v600
    %v932 = vadd.f32 %v201, %v602
    %v933 = vadd.f32 %v202, %v829
    %v934 = vadd.f32 %v203, %v606
    %v935 = vadd.f32 %v204, %v608
    %v936 = vadd.f32 %v205, %v834
    %v937 = vadd.f32 %v206, %v612
    %v938 = vadd.f32 %v207, %v614
    %v939 = vadd.f32 %v208, %v839
    %v940 = vadd.f32 %v209, %v618
    %v941 = vadd.f32 %v210, %v620
    %v942 = vadd.f32 %v211, %v844
    %943 = vst [vmem:[#allocation2] sm:$0xff] %v847
    %944 = vst [vmem:[#allocation2 + $0x8] sm:$0xff] %v848
    %945 = vst [vmem:[#allocation2 + $0x10] sm:$0xff] %v849
    %946 = vst [vmem:[#allocation2 + $0x18] sm:$0xff] %v850
    %947 = vst [vmem:[#allocation2 + $0x20] sm:$0xff] %v851
    %948 = vst [vmem:[#allocation2 + $0x28] sm:$0xff] %v852
    %949 = vst [vmem:[#allocation2 + $0x30] sm:$0xff] %v853
    %950 = vst [vmem:[#allocation2 + $0x38] sm:$0xff] %v854
    %951 = vst [vmem:[#allocation2 + $0x40] sm:$0xff] %v855
    %952 = vst [vmem:[#allocation2 + $0x48] sm:$0xff] %v856
    %953 = vst [vmem:[#allocation2 + $0x50] sm:$0xff] %v857
    %954 = vst [vmem:[#allocation2 + $0x58] sm:$0xff] %v858
    %955 = vst [vmem:[#allocation2 + $0x60] sm:$0xff] %v859
    %956 = vst [vmem:[#allocation2 + $0x68] sm:$0xff] %v860
    %957 = vst [vmem:[#allocation2 + $0x70] sm:$0xff] %v861
    %958 = vst [vmem:[#allocation2 + $0x78] sm:$0xff] %v862
    %959 = vst [vmem:[#allocation2 + $0x80] sm:$0xff] %v863
    %960 = vst [vmem:[#allocation2 + $0x88] sm:$0xff] %v864
    %961 = vst [vmem:[#allocation2 + $0x90] sm:$0xff] %v865
    %962 = vst [vmem:[#allocation2 + $0x98] sm:$0xff] %v866
    %963 = vst [vmem:[#allocation2 + $0xa0] sm:$0xff] %v867
    %964 = vst [vmem:[#allocation2 + $0xa8] sm:$0xff] %v868
    %965 = vst [vmem:[#allocation2 + $0xb0] sm:$0xff] %v869
    %966 = vst [vmem:[#allocation2 + $0xb8] sm:$0xff] %v870
    %967 = vst [vmem:[#allocation2 + $0xc0] sm:$0xff] %v871
    %968 = vst [vmem:[#allocation2 + $0xc8] sm:$0xff] %v872
    %969 = vst [vmem:[#allocation2 + $0xd0] sm:$0xff] %v873
    %970 = vst [vmem:[#allocation2 + $0xd8] sm:$0xff] %v874
    %971 = vst [vmem:[#allocation2 + $0xe0] sm:$0xff] %v875
    %972 = vst [vmem:[#allocation2 + $0xe8] sm:$0xff] %v876
    %973 = vst [vmem:[#allocation2 + $0xf0] sm:$0xff] %v877
    %974 = vst [vmem:[#allocation2 + $0xf8] sm:$0xff] %v878
    %975 = vst [vmem:[#allocation2 + $0x100] sm:$0xff] %v879
    %976 = vst [vmem:[#allocation2 + $0x108] sm:$0xff] %v880
    %977 = vst [vmem:[#allocation2 + $0x110] sm:$0xff] %v881
    %978 = vst [vmem:[#allocation2 + $0x118] sm:$0xff] %v882
    %979 = vst [vmem:[#allocation2 + $0x120] sm:$0xff] %v883
    %980 = vst [vmem:[#allocation2 + $0x128] sm:$0xff] %v884
    %981 = vst [vmem:[#allocation2 + $0x130] sm:$0xff] %v885
    %982 = vst [vmem:[#allocation2 + $0x138] sm:$0xff] %v886
    %983 = vst [vmem:[#allocation2 + $0x140] sm:$0xff] %v887
    %984 = vst [vmem:[#allocation2 + $0x148] sm:$0xff] %v888
    %985 = vst [vmem:[#allocation2 + $0x150] sm:$0xff] %v889
    %986 = vst [vmem:[#allocation2 + $0x158] sm:$0xff] %v890
    %987 = vst [vmem:[#allocation2 + $0x160] sm:$0xff] %v891
    %988 = vst [vmem:[#allocation2 + $0x168] sm:$0xff] %v892
    %989 = vst [vmem:[#allocation2 + $0x170] sm:$0xff] %v893
    %990 = vst [vmem:[#allocation2 + $0x178] sm:$0xff] %v894
    %991 = vst [vmem:[#allocation2 + $0x180] sm:$0xff] %v895
    %992 = vst [vmem:[#allocation2 + $0x188] sm:$0xff] %v896
    %993 = vst [vmem:[#allocation2 + $0x190] sm:$0xff] %v897
    %994 = vst [vmem:[#allocation2 + $0x198] sm:$0xff] %v898
    %995 = vst [vmem:[#allocation2 + $0x1a0] sm:$0xff] %v899
    %996 = vst [vmem:[#allocation2 + $0x1a8] sm:$0xff] %v900
    %997 = vst [vmem:[#allocation2 + $0x1b0] sm:$0xff] %v901
    %998 = vst [vmem:[#allocation2 + $0x1b8] sm:$0xff] %v902
    %999 = vst [vmem:[#allocation2 + $0x1c0] sm:$0xff] %v903
    %1000 = vst [vmem:[#allocation2 + $0x1c8] sm:$0xff] %v904
    %1001 = vst [vmem:[#allocation2 + $0x1d0] sm:$0xff] %v905
    %1002 = vst [vmem:[#allocation2 + $0x1d8] sm:$0xff] %v906
    %1003 = vst [vmem:[#allocation2 + $0x1e0] sm:$0xff] %v907
    %1004 = vst [vmem:[#allocation2 + $0x1e8] sm:$0xff] %v908
    %1005 = vst [vmem:[#allocation2 + $0x1f0] sm:$0xff] %v909
    %1006 = vst [vmem:[#allocation2 + $0x1f8] sm:$0xff] %v910
    %1007 = vst [vmem:[#allocation2 + $0x200] sm:$0xff] %v911
    %1008 = vst [vmem:[#allocation2 + $0x208] sm:$0xff] %v912
    %1009 = vst [vmem:[#allocation2 + $0x210] sm:$0xff] %v913
    %1010 = vst [vmem:[#allocation2 + $0x218] sm:$0xff] %v914
    %1011 = vst [vmem:[#allocation2 + $0x220] sm:$0xff] %v915
    %1012 = vst [vmem:[#allocation2 + $0x228] sm:$0xff] %v916
    %1013 = vst [vmem:[#allocation2 + $0x230] sm:$0xff] %v917
    %1014 = vst [vmem:[#allocation2 + $0x238] sm:$0xff] %v918
    %1015 = vst [vmem:[#allocation2 + $0x240] sm:$0xff] %v919
    %1016 = vst [vmem:[#allocation2 + $0x248] sm:$0xff] %v920
    %1017 = vst [vmem:[#allocation2 + $0x250] sm:$0xff] %v921
    %1018 = vst [vmem:[#allocation2 + $0x258] sm:$0xff] %v922
    %1019 = vst [vmem:[#allocation2 + $0x260] sm:$0xff] %v923
    %1020 = vst [vmem:[#allocation2 + $0x268] sm:$0xff] %v924
    %1021 = vst [vmem:[#allocation2 + $0x270] sm:$0xff] %v925
    %1022 = vst [vmem:[#allocation2 + $0x278] sm:$0xff] %v926
    %1023 = vst [vmem:[#allocation2 + $0x280] sm:$0xff] %v927
    %1024 = vst [vmem:[#allocation2 + $0x288] sm:$0xff] %v928
    %1025 = vst [vmem:[#allocation2 + $0x290] sm:$0xff] %v929
    %1026 = vst [vmem:[#allocation2 + $0x298] sm:$0xff] %v930
    %1027 = vst [vmem:[#allocation2 + $0x2a0] sm:$0xff] %v931
    %1028 = vst [vmem:[#allocation2 + $0x2a8] sm:$0xff] %v932
    %1029 = vst [vmem:[#allocation2 + $0x2b0] sm:$0xff] %v933
    %1030 = vst [vmem:[#allocation2 + $0x2b8] sm:$0xff] %v934
    %1031 = vst [vmem:[#allocation2 + $0x2c0] sm:$0xff] %v935
    %1032 = vst [vmem:[#allocation2 + $0x2c8] sm:$0xff] %v936
    %1033 = vst [vmem:[#allocation2 + $0x2d0] sm:$0xff] %v937
    %1034 = vst [vmem:[#allocation2 + $0x2d8] sm:$0xff] %v938
    %1035 = vst [vmem:[#allocation2 + $0x2e0] sm:$0xff] %v939
    %1036 = vst [vmem:[#allocation2 + $0x2e8] sm:$0xff] %v940
    %1037 = vst [vmem:[#allocation2 + $0x2f0] sm:$0xff] %v941
    %1038 = vst [vmem:[#allocation2 + $0x2f8] sm:$0xff] %v942
    // Predicated region
    $region14: #{tpu_custom_call.1} parent=1 // pred_check
      %p1039 = pneg %p16
    $region15: #{tpu_custom_call.1} parent=1 // pred_check_branch
      %1041 = sbr.rel (%p1039) target = $region17
    $region16: #{tpu_custom_call.1} parent=1 // pred_region
      %v1042 = vld [vmem:[#allocation2] sm:$0xff]
      %v1043 = vld [vmem:[#allocation2 + $0x8] sm:$0xff]
      %v1044 = vld [vmem:[#allocation2 + $0x10] sm:$0xff]
      %v1045 = vld [vmem:[#allocation2 + $0x18] sm:$0xff]
      %v1046 = vld [vmem:[#allocation2 + $0x20] sm:$0xff]
      %v1047 = vld [vmem:[#allocation2 + $0x28] sm:$0xff]
      %v1048 = vld [vmem:[#allocation2 + $0x30] sm:$0xff]
      %v1049 = vld [vmem:[#allocation2 + $0x38] sm:$0xff]
      %v1050 = vld [vmem:[#allocation2 + $0x40] sm:$0xff]
      %v1051 = vld [vmem:[#allocation2 + $0x48] sm:$0xff]
      %v1052 = vld [vmem:[#allocation2 + $0x50] sm:$0xff]
      %v1053 = vld [vmem:[#allocation2 + $0x58] sm:$0xff]
      %v1054 = vld [vmem:[#allocation2 + $0x60] sm:$0xff]
      %v1055 = vld [vmem:[#allocation2 + $0x68] sm:$0xff]
      %v1056 = vld [vmem:[#allocation2 + $0x70] sm:$0xff]
      %v1057 = vld [vmem:[#allocation2 + $0x78] sm:$0xff]
      %v1058 = vld [vmem:[#allocation2 + $0x80] sm:$0xff]
      %v1059 = vld [vmem:[#allocation2 + $0x88] sm:$0xff]
      %v1060 = vld [vmem:[#allocation2 + $0x90] sm:$0xff]
      %v1061 = vld [vmem:[#allocation2 + $0x98] sm:$0xff]
      %v1062 = vld [vmem:[#allocation2 + $0xa0] sm:$0xff]
      %v1063 = vld [vmem:[#allocation2 + $0xa8] sm:$0xff]
      %v1064 = vld [vmem:[#allocation2 + $0xb0] sm:$0xff]
      %v1065 = vld [vmem:[#allocation2 + $0xb8] sm:$0xff]
      %v1066 = vld [vmem:[#allocation2 + $0xc0] sm:$0xff]
      %v1067 = vld [vmem:[#allocation2 + $0xc8] sm:$0xff]
      %v1068 = vld [vmem:[#allocation2 + $0xd0] sm:$0xff]
      %v1069 = vld [vmem:[#allocation2 + $0xd8] sm:$0xff]
      %v1070 = vld [vmem:[#allocation2 + $0xe0] sm:$0xff]
      %v1071 = vld [vmem:[#allocation2 + $0xe8] sm:$0xff]
      %v1072 = vld [vmem:[#allocation2 + $0xf0] sm:$0xff]
      %v1073 = vld [vmem:[#allocation2 + $0xf8] sm:$0xff]
      %v1074 = vld [vmem:[#allocation2 + $0x100] sm:$0xff]
      %v1075 = vld [vmem:[#allocation2 + $0x108] sm:$0xff]
      %v1076 = vld [vmem:[#allocation2 + $0x110] sm:$0xff]
      %v1077 = vld [vmem:[#allocation2 + $0x118] sm:$0xff]
      %v1078 = vld [vmem:[#allocation2 + $0x120] sm:$0xff]
      %v1079 = vld [vmem:[#allocation2 + $0x128] sm:$0xff]
      %v1080 = vld [vmem:[#allocation2 + $0x130] sm:$0xff]
      %v1081 = vld [vmem:[#allocation2 + $0x138] sm:$0xff]
      %v1082 = vld [vmem:[#allocation2 + $0x140] sm:$0xff]
      %v1083 = vld [vmem:[#allocation2 + $0x148] sm:$0xff]
      %v1084 = vld [vmem:[#allocation2 + $0x150] sm:$0xff]
      %v1085 = vld [vmem:[#allocation2 + $0x158] sm:$0xff]
      %v1086 = vld [vmem:[#allocation2 + $0x160] sm:$0xff]
      %v1087 = vld [vmem:[#allocation2 + $0x168] sm:$0xff]
      %v1088 = vld [vmem:[#allocation2 + $0x170] sm:$0xff]
      %v1089 = vld [vmem:[#allocation2 + $0x178] sm:$0xff]
      %v1090 = vld [vmem:[#allocation2 + $0x180] sm:$0xff]
      %v1091 = vld [vmem:[#allocation2 + $0x188] sm:$0xff]
      %v1092 = vld [vmem:[#allocation2 + $0x190] sm:$0xff]
      %v1093 = vld [vmem:[#allocation2 + $0x198] sm:$0xff]
      %v1094 = vld [vmem:[#allocation2 + $0x1a0] sm:$0xff]
      %v1095 = vld [vmem:[#allocation2 + $0x1a8] sm:$0xff]
      %v1096 = vld [vmem:[#allocation2 + $0x1b0] sm:$0xff]
      %v1097 = vld [vmem:[#allocation2 + $0x1b8] sm:$0xff]
      %v1098 = vld [vmem:[#allocation2 + $0x1c0] sm:$0xff]
      %v1099 = vld [vmem:[#allocation2 + $0x1c8] sm:$0xff]
      %v1100 = vld [vmem:[#allocation2 + $0x1d0] sm:$0xff]
      %v1101 = vld [vmem:[#allocation2 + $0x1d8] sm:$0xff]
      %v1102 = vld [vmem:[#allocation2 + $0x1e0] sm:$0xff]
      %v1103 = vld [vmem:[#allocation2 + $0x1e8] sm:$0xff]
      %v1104 = vld [vmem:[#allocation2 + $0x1f0] sm:$0xff]
      %v1105 = vld [vmem:[#allocation2 + $0x1f8] sm:$0xff]
      %v1106 = vld [vmem:[#allocation2 + $0x200] sm:$0xff]
      %v1107 = vld [vmem:[#allocation2 + $0x208] sm:$0xff]
      %v1108 = vld [vmem:[#allocation2 + $0x210] sm:$0xff]
      %v1109 = vld [vmem:[#allocation2 + $0x218] sm:$0xff]
      %v1110 = vld [vmem:[#allocation2 + $0x220] sm:$0xff]
      %v1111 = vld [vmem:[#allocation2 + $0x228] sm:$0xff]
      %v1112 = vld [vmem:[#allocation2 + $0x230] sm:$0xff]
      %v1113 = vld [vmem:[#allocation2 + $0x238] sm:$0xff]
      %v1114 = vld [vmem:[#allocation2 + $0x240] sm:$0xff]
      %v1115 = vld [vmem:[#allocation2 + $0x248] sm:$0xff]
      %v1116 = vld [vmem:[#allocation2 + $0x250] sm:$0xff]
      %v1117 = vld [vmem:[#allocation2 + $0x258] sm:$0xff]
      %v1118 = vld [vmem:[#allocation2 + $0x260] sm:$0xff]
      %v1119 = vld [vmem:[#allocation2 + $0x268] sm:$0xff]
      %v1120 = vld [vmem:[#allocation2 + $0x270] sm:$0xff]
      %v1121 = vld [vmem:[#allocation2 + $0x278] sm:$0xff]
      %v1122 = vld [vmem:[#allocation2 + $0x280] sm:$0xff]
      %v1123 = vld [vmem:[#allocation2 + $0x288] sm:$0xff]
      %v1124 = vld [vmem:[#allocation2 + $0x290] sm:$0xff]
      %v1125 = vld [vmem:[#allocation2 + $0x298] sm:$0xff]
      %v1126 = vld [vmem:[#allocation2 + $0x2a0] sm:$0xff]
      %v1127 = vld [vmem:[#allocation2 + $0x2a8] sm:$0xff]
      %v1128 = vld [vmem:[#allocation2 + $0x2b0] sm:$0xff]
      %v1129 = vld [vmem:[#allocation2 + $0x2b8] sm:$0xff]
      %v1130 = vld [vmem:[#allocation2 + $0x2c0] sm:$0xff]
      %v1131 = vld [vmem:[#allocation2 + $0x2c8] sm:$0xff]
      %v1132 = vld [vmem:[#allocation2 + $0x2d0] sm:$0xff]
      %v1133 = vld [vmem:[#allocation2 + $0x2d8] sm:$0xff]
      %v1134 = vld [vmem:[#allocation2 + $0x2e0] sm:$0xff]
      %v1135 = vld [vmem:[#allocation2 + $0x2e8] sm:$0xff]
      %v1136 = vld [vmem:[#allocation2 + $0x2f0] sm:$0xff]
      %v1137 = vld [vmem:[#allocation2 + $0x2f8] sm:$0xff]
      %1138 = vst [vmem:[#allocation3] sm:$0xff] %v1042
      %1139 = vst [vmem:[#allocation3 + $0x8] sm:$0xff] %v1045
      %1140 = vst [vmem:[#allocation3 + $0x10] sm:$0xff] %v1048
      %1141 = vst [vmem:[#allocation3 + $0x18] sm:$0xff] %v1051
      %1142 = vst [vmem:[#allocation3 + $0x20] sm:$0xff] %v1054
      %1143 = vst [vmem:[#allocation3 + $0x28] sm:$0xff] %v1057
      %1144 = vst [vmem:[#allocation3 + $0x30] sm:$0xff] %v1060
      %1145 = vst [vmem:[#allocation3 + $0x38] sm:$0xff] %v1063
      %1146 = vst [vmem:[#allocation3 + $0x40] sm:$0xff] %v1066
      %1147 = vst [vmem:[#allocation3 + $0x48] sm:$0xff] %v1069
      %1148 = vst [vmem:[#allocation3 + $0x50] sm:$0xff] %v1072
      %1149 = vst [vmem:[#allocation3 + $0x58] sm:$0xff] %v1075
      %1150 = vst [vmem:[#allocation3 + $0x60] sm:$0xff] %v1078
      %1151 = vst [vmem:[#allocation3 + $0x68] sm:$0xff] %v1081
      %1152 = vst [vmem:[#allocation3 + $0x70] sm:$0xff] %v1084
      %1153 = vst [vmem:[#allocation3 + $0x78] sm:$0xff] %v1087
      %1154 = vst [vmem:[#allocation3 + $0x80] sm:$0xff] %v1090
      %1155 = vst [vmem:[#allocation3 + $0x88] sm:$0xff] %v1093
      %1156 = vst [vmem:[#allocation3 + $0x90] sm:$0xff] %v1096
      %1157 = vst [vmem:[#allocation3 + $0x98] sm:$0xff] %v1099
      %1158 = vst [vmem:[#allocation3 + $0xa0] sm:$0xff] %v1102
      %1159 = vst [vmem:[#allocation3 + $0xa8] sm:$0xff] %v1105
      %1160 = vst [vmem:[#allocation3 + $0xb0] sm:$0xff] %v1108
      %1161 = vst [vmem:[#allocation3 + $0xb8] sm:$0xff] %v1111
      %1162 = vst [vmem:[#allocation3 + $0xc0] sm:$0xff] %v1114
      %1163 = vst [vmem:[#allocation3 + $0xc8] sm:$0xff] %v1117
      %1164 = vst [vmem:[#allocation3 + $0xd0] sm:$0xff] %v1120
      %1165 = vst [vmem:[#allocation3 + $0xd8] sm:$0xff] %v1123
      %1166 = vst [vmem:[#allocation3 + $0xe0] sm:$0xff] %v1126
      %1167 = vst [vmem:[#allocation3 + $0xe8] sm:$0xff] %v1129
      %1168 = vst [vmem:[#allocation3 + $0xf0] sm:$0xff] %v1132
      %1169 = vst [vmem:[#allocation3 + $0xf8] sm:$0xff] %v1135
      %1170 = vst [vmem:[#allocation5] sm:$0xff] %v1043
      %1171 = vst [vmem:[#allocation5 + $0x8] sm:$0xff] %v1046
      %1172 = vst [vmem:[#allocation5 + $0x10] sm:$0xff] %v1049
      %1173 = vst [vmem:[#allocation5 + $0x18] sm:$0xff] %v1052
      %1174 = vst [vmem:[#allocation5 + $0x20] sm:$0xff] %v1055
      %1175 = vst [vmem:[#allocation5 + $0x28] sm:$0xff] %v1058
      %1176 = vst [vmem:[#allocation5 + $0x30] sm:$0xff] %v1061
      %1177 = vst [vmem:[#allocation5 + $0x38] sm:$0xff] %v1064
      %1178 = vst [vmem:[#allocation5 + $0x40] sm:$0xff] %v1067
      %1179 = vst [vmem:[#allocation5 + $0x48] sm:$0xff] %v1070
      %1180 = vst [vmem:[#allocation5 + $0x50] sm:$0xff] %v1073
      %1181 = vst [vmem:[#allocation5 + $0x58] sm:$0xff] %v1076
      %1182 = vst [vmem:[#allocation5 + $0x60] sm:$0xff] %v1079
      %1183 = vst [vmem:[#allocation5 + $0x68] sm:$0xff] %v1082
      %1184 = vst [vmem:[#allocation5 + $0x70] sm:$0xff] %v1085
      %1185 = vst [vmem:[#allocation5 + $0x78] sm:$0xff] %v1088
      %1186 = vst [vmem:[#allocation5 + $0x80] sm:$0xff] %v1091
      %1187 = vst [vmem:[#allocation5 + $0x88] sm:$0xff] %v1094
      %1188 = vst [vmem:[#allocation5 + $0x90] sm:$0xff] %v1097
      %1189 = vst [vmem:[#allocation5 + $0x98] sm:$0xff] %v1100
      %1190 = vst [vmem:[#allocation5 + $0xa0] sm:$0xff] %v1103
      %1191 = vst [vmem:[#allocation5 + $0xa8] sm:$0xff] %v1106
      %1192 = vst [vmem:[#allocation5 + $0xb0] sm:$0xff] %v1109
      %1193 = vst [vmem:[#allocation5 + $0xb8] sm:$0xff] %v1112
      %1194 = vst [vmem:[#allocation5 + $0xc0] sm:$0xff] %v1115
      %1195 = vst [vmem:[#allocation5 + $0xc8] sm:$0xff] %v1118
      %1196 = vst [vmem:[#allocation5 + $0xd0] sm:$0xff] %v1121
      %1197 = vst [vmem:[#allocation5 + $0xd8] sm:$0xff] %v1124
      %1198 = vst [vmem:[#allocation5 + $0xe0] sm:$0xff] %v1127
      %1199 = vst [vmem:[#allocation5 + $0xe8] sm:$0xff] %v1130
      %1200 = vst [vmem:[#allocation5 + $0xf0] sm:$0xff] %v1133
      %1201 = vst [vmem:[#allocation5 + $0xf8] sm:$0xff] %v1136
      %1202 = vst [vmem:[#allocation7] sm:$0xff] %v1044
      %1203 = vst [vmem:[#allocation7 + $0x8] sm:$0xff] %v1047
      %1204 = vst [vmem:[#allocation7 + $0x10] sm:$0xff] %v1050
      %1205 = vst [vmem:[#allocation7 + $0x18] sm:$0xff] %v1053
      %1206 = vst [vmem:[#allocation7 + $0x20] sm:$0xff] %v1056
      %1207 = vst [vmem:[#allocation7 + $0x28] sm:$0xff] %v1059
      %1208 = vst [vmem:[#allocation7 + $0x30] sm:$0xff] %v1062
      %1209 = vst [vmem:[#allocation7 + $0x38] sm:$0xff] %v1065
      %1210 = vst [vmem:[#allocation7 + $0x40] sm:$0xff] %v1068
      %1211 = vst [vmem:[#allocation7 + $0x48] sm:$0xff] %v1071
      %1212 = vst [vmem:[#allocation7 + $0x50] sm:$0xff] %v1074
      %1213 = vst [vmem:[#allocation7 + $0x58] sm:$0xff] %v1077
      %1214 = vst [vmem:[#allocation7 + $0x60] sm:$0xff] %v1080
      %1215 = vst [vmem:[#allocation7 + $0x68] sm:$0xff] %v1083
      %1216 = vst [vmem:[#allocation7 + $0x70] sm:$0xff] %v1086
      %1217 = vst [vmem:[#allocation7 + $0x78] sm:$0xff] %v1089
      %1218 = vst [vmem:[#allocation7 + $0x80] sm:$0xff] %v1092
      %1219 = vst [vmem:[#allocation7 + $0x88] sm:$0xff] %v1095
      %1220 = vst [vmem:[#allocation7 + $0x90] sm:$0xff] %v1098
      %1221 = vst [vmem:[#allocation7 + $0x98] sm:$0xff] %v1101
      %1222 = vst [vmem:[#allocation7 + $0xa0] sm:$0xff] %v1104
      %1223 = vst [vmem:[#allocation7 + $0xa8] sm:$0xff] %v1107
      %1224 = vst [vmem:[#allocation7 + $0xb0] sm:$0xff] %v1110
      %1225 = vst [vmem:[#allocation7 + $0xb8] sm:$0xff] %v1113
      %1226 = vst [vmem:[#allocation7 + $0xc0] sm:$0xff] %v1116
      %1227 = vst [vmem:[#allocation7 + $0xc8] sm:$0xff] %v1119
      %1228 = vst [vmem:[#allocation7 + $0xd0] sm:$0xff] %v1122
      %1229 = vst [vmem:[#allocation7 + $0xd8] sm:$0xff] %v1125
      %1230 = vst [vmem:[#allocation7 + $0xe0] sm:$0xff] %v1128
      %1231 = vst [vmem:[#allocation7 + $0xe8] sm:$0xff] %v1131
      %1232 = vst [vmem:[#allocation7 + $0xf0] sm:$0xff] %v1134
      %1233 = vst [vmem:[#allocation7 + $0xf8] sm:$0xff] %v1137
    $region17: #{tpu_custom_call.1} parent=1 // pred_fallthru
      _
    // Predicated region
    $region18: #{tpu_custom_call.1} parent=1 // pred_check
      _
    $region19: #{tpu_custom_call.1} parent=1 // pred_check_branch
      %1235 = sbr.rel (0) target = $region21
    $region20: #{tpu_custom_call.1} parent=1 // pred_region
      %s1237 = ssub.s32 4096, 4096
      %1238 = vsyncadd [#allocation4], %s1237
      %s1239 = sshll.u32 [#allocation3], 4
      %s1240 = int_to_ptr.vmem [resolvable:$true] %s1239
      %1245 = dma.vmem_to_hbm [thread:$0]  %s1240, 4096, %s2, [#allocation4], 128, 128, 8
    $region21: #{tpu_custom_call.1} parent=1 // pred_fallthru
      _
    // Predicated region
    $region22: #{tpu_custom_call.1} parent=1 // pred_check
      _
    $region23: #{tpu_custom_call.1} parent=1 // pred_check_branch
      %1247 = sbr.rel (0) target = $region25
    $region24: #{tpu_custom_call.1} parent=1 // pred_region
      %s1249 = ssub.s32 4096, 4096
      %1250 = vsyncadd [#allocation6], %s1249
      %s1251 = sshll.u32 [#allocation5], 4
      %s1252 = int_to_ptr.vmem [resolvable:$true] %s1251
      %1257 = dma.vmem_to_hbm [thread:$0]  %s1252, 4096, %s3, [#allocation6], 128, 128, 8
    $region25: #{tpu_custom_call.1} parent=1 // pred_fallthru
      _
    // Predicated region
    $region26: #{tpu_custom_call.1} parent=1 // pred_check
      _
    $region27: #{tpu_custom_call.1} parent=1 // pred_check_branch
      %1259 = sbr.rel (0) target = $region29
    $region28: #{tpu_custom_call.1} parent=1 // pred_region
      %s1261 = ssub.s32 4096, 4096
      %1262 = vsyncadd [#allocation6], %s1261
      %s1263 = sshll.u32 [#allocation7], 4
      %s1264 = int_to_ptr.vmem [resolvable:$true] %s1263
      %1269 = dma.vmem_to_hbm [thread:$0]  %s1264, 4096, %s4, [#allocation6], 128, 128, 8
    $region29: #{tpu_custom_call.1} parent=1 // pred_fallthru
      _
    // Predicated region
    $region30: #{tpu_custom_call.1} parent=1 // pred_check
      _
    $region31: #{tpu_custom_call.1} parent=1 // pred_check_branch
      %1271 = sbr.rel (0) target = $region33
    $region32: #{tpu_custom_call.1} parent=1 // pred_region
      %1272 = dma.done [#allocation4], 4096
    $region33: #{tpu_custom_call.1} parent=1 // pred_fallthru
      _
    // Predicated region
    $region34: #{tpu_custom_call.1} parent=1 // pred_check
      _
    $region35: #{tpu_custom_call.1} parent=1 // pred_check_branch
      %1274 = sbr.rel (0) target = $region37
    $region36: #{tpu_custom_call.1} parent=1 // pred_region
      %1275 = dma.done [#allocation6], 4096
    $region37: #{tpu_custom_call.1} parent=1 // pred_fallthru
      _
    // Predicated region
    $region38: #{tpu_custom_call.1} parent=1 // pred_check
      _
    $region39: #{tpu_custom_call.1} parent=1 // pred_check_branch
      %1277 = sbr.rel (0) target = $region41
    $region40: #{tpu_custom_call.1} parent=1 // pred_region
      %1278 = dma.done [#allocation6], 4096
    $region41: #{tpu_custom_call.1} parent=1 // pred_fallthru
      _
    %1279 = vsyncpa [#allocation4], 1
    %1280 = vsyncpa [#allocation6], 1

</llo_original>
